<compile_context>
chip_gen: v7x
topology: tpu7x:2x2x1
jax: 0.10.0
libtpu: 0.0.40
codegen_flags: <defaults>
</compile_context>

<pallas_src>
import numpy as np
import jax
import jax.numpy as jnp
from jax.experimental import pallas as pl
from jax.experimental.pallas import tpu as pltpu

# ----------------------- model config (small, synthetic) ---------------------
N_RESBLOCKS = 2
N_FEATS     = 2
TRAN_NUM    = 4            # effective feature channels = N_FEATS * TRAN_NUM = 8
KSIZE       = 3
SCALE       = 2
N_COLORS    = 3
RGB_RANGE   = 255.0
RES_SCALE   = 1.0
RGB_MEAN    = np.array([0.4488, 0.4371, 0.4040], np.float32)   # rgb_std = 1.0

C_FEAT  = N_FEATS * TRAN_NUM          # 8
C_UP    = C_FEAT * SCALE * SCALE      # 32 (up-conv output channels)
CIN_PAD = 8                           # input channels zero-padded 3 -> 8
C_TAIL  = N_COLORS * SCALE * SCALE    # 12 sub-pixel output rows (o*4 + a*2 + b)

VMEM_LIMIT_BYTES = 32 * 1024 * 1024   # explicit budget; safe on v5e/v6e/v7x


# --------------------------- static (host) helpers ----------------------------
def _tap_offsets(K):
    p = (K - 1) // 2
    return [(kh - p, kw - p) for kh in range(K) for kw in range(K)]


def _shift_list(H, W, K, hwb):
    # lane-axis roll amount realising each (dh, dw) conv tap on a
    # channels-first, spatially flattened (C, n_imgs*H*W) activation
    return [(-(dh * W + dw)) % hwb for dh, dw in _tap_offsets(K)]


def _border_masks(H, W, K, n_imgs):
    """(K*K, n_imgs*H*W) f32: 1 where a tap reads inside its own image, 0 where
    the rolled read would wrap across an image border ('same' zero padding)."""
    pos = np.arange(H * W)
    hh, ww = pos // W, pos % W
    rows = []
    for dh, dw in _tap_offsets(K):
        valid = ((hh + dh >= 0) & (hh + dh < H) & (ww + dw >= 0) & (ww + dw < W))
        rows.append(valid.astype(np.float32))
    m = np.stack(rows, axis=0)                 # (K*K, H*W)
    return np.tile(m, (1, n_imgs))             # (K*K, n_imgs*H*W)


# ------------------------------ fused body kernel ------------------------------
def _make_fused_kernel(n_resblocks, imgs_per_step, H, W, K, res_scale):
    HW = H * W
    hwb = imgs_per_step * HW
    shifts = _shift_list(H, W, K, hwb)

    def patches_bf16(x, mask_block):
        # 9 shifted copies via pltpu.roll (XLU slot), one fused border-mask
        # multiply (VPU), then cast to bf16 for the MXU's native input dtype.
        pieces = [x if s == 0 else pltpu.roll(x, shift=s, axis=1) for s in shifts]
        pat = jnp.concatenate(pieces, axis=0) * mask_block
        return pat.astype(jnp.bfloat16)

    def conv(x, w_ref, b_ref, mask_block):
        pat = patches_bf16(x, mask_block)                       # (K*K*Cin, hwb)
        return jnp.dot(w_ref[...], pat,
                       preferred_element_type=jnp.float32) + b_ref[...]

    def kernel(*refs):
        (x_ref, mean_ref, mask8_ref, mask_up_ref, head_w, head_b) = refs[:6]
        blocks = refs[6:6 + 4 * n_resblocks]
        up_w, up_b, tail_w, tail_b, o_ref = refs[6 + 4 * n_resblocks:]

        mask8 = mask8_ref[...]                                  # (9*8,  hwb)
        mask_up = mask_up_ref[...]                              # (9*4C, hwb)

        # pack this grid step's images side by side along the lane axis
        if imgs_per_step == 1:
            x = x_ref[0]
        else:
            x = jnp.concatenate([x_ref[i] for i in range(imgs_per_step)], axis=1)

        # sub_mean (MeanShift, sign=-1); padded channels subtract 0
        x = x - mean_ref[...]                                   # (CIN_PAD, hwb)

        feat = conv(x, head_w, head_b, mask8)                   # (C_FEAT, hwb)

        res = feat
        for i in range(n_resblocks):
            w1, b1, w2, b2 = blocks[4 * i:4 * i + 4]
            h = conv(res, w1, b1, mask8)
            h = jnp.maximum(h, 0.0)                             # ReLU
            h = conv(h, w2, b2, mask8)
            res = res + (h if res_scale == 1.0 else res_scale * h)
        res = res + feat                                        # global skip

        up = conv(res, up_w, up_b, mask8)                       # (C_UP, hwb)

        # PixelShuffle(2) + tail 3x3 conv + add_mean folded into ONE matmul:
        # each output sub-pixel (a,b) is an equivalent small conv over the
        # low-res up map; tail_w is the pre-built (12, 9*C_UP) weight and
        # tail_b already contains tail bias + rgb_range*rgb_mean.
        out = conv(up, tail_w, tail_b, mask_up)                 # (12, hwb)

        for i in range(imgs_per_step):
            o_ref[i] = out[:, i * HW:(i + 1) * HW].astype(o_ref.dtype)

    return kernel


# ------------------------------ pallas_call wrapper ----------------------------
def _full_spec(shape):
    nd = len(shape)
    return pl.BlockSpec(shape, lambda g: (0,) * nd)


def _images_per_step(n):
    # Merge images per grid step to amortise the fixed per-step cost, but keep
    # >= 2 grid steps when possible so both v7x TensorCores get work.
    if n <= 2:
        return 1
    for b in range(min(8, n // 2), 0, -1):
        if n % b == 0:
            return b
    return 1


def edsr_plus_forward(x_nchw, pf):
    """Full EDSR_plus forward.  `pf` = prepare_params(params) (host-side, once)."""
    N, _, H, W = x_nchw.shape
    HW = H * W
    B = _images_per_step(N)
    steps = N // B

    # channels-first, channel-padded (3 -> 8), spatially flattened input
    xp = jnp.pad(x_nchw, ((0, 0), (0, CIN_PAD - N_COLORS), (0, 0), (0, 0)))
    x_flat = xp.reshape(N, CIN_PAD, HW)

    mean_col = np.zeros((CIN_PAD, 1), np.float32)
    mean_col[:N_COLORS, 0] = RGB_MEAN * RGB_RANGE
    mean_col = jnp.asarray(mean_col)

    # precomputed border masks, already expanded to the patch-block row layout
    m = _border_masks(H, W, KSIZE, B)                           # (9, B*HW)
    mask8 = jnp.asarray(np.repeat(m, C_FEAT, axis=0))           # (72,  B*HW)
    mask_up = jnp.asarray(np.repeat(m, C_UP, axis=0))           # (288, B*HW)

    weights = [pf["head_w"], pf["head_b"]]
    for i in range(N_RESBLOCKS):
        weights += [pf[f"body{i}_w1"], pf[f"body{i}_b1"],
                    pf[f"body{i}_w2"], pf[f"body{i}_b2"]]
    weights += [pf["up_w"], pf["up_b"], pf["tail_w"], pf["tail_b"]]

    in_specs = [pl.BlockSpec((B, CIN_PAD, HW), lambda g: (g, 0, 0)),
                _full_spec(mean_col.shape),
                _full_spec(mask8.shape),
                _full_spec(mask_up.shape)]
    in_specs += [_full_spec(w.shape) for w in weights]

    kernel = _make_fused_kernel(N_RESBLOCKS, B, H, W, KSIZE, RES_SCALE)
    out12 = pl.pallas_call(
        kernel,
        out_shape=jax.ShapeDtypeStruct((N, C_TAIL, HW), jnp.float32),
        grid=(steps,),
        in_specs=in_specs,
        out_specs=pl.BlockSpec((B, C_TAIL, HW), lambda g: (g, 0, 0)),
        compiler_params=pltpu.CompilerParams(
            dimension_semantics=("parallel",),
            vmem_limit_bytes=VMEM_LIMIT_BYTES),
    )(x_flat, mean_col, mask8, mask_up, *weights)

    # out12 rows are ordered o*4 + a*2 + b (colour o, sub-pixel (a,b)); the
    # final PixelShuffle interleave is a tiny XLA reshape/transpose.
    # TODO(synk): could be removed entirely with lane-interleaving stores.
    Hu, Wu = H * SCALE, W * SCALE
    t = out12.reshape(N, N_COLORS, SCALE, SCALE, H, W)
    return jnp.transpose(t, (0, 1, 4, 2, 5, 3)).reshape(N, N_COLORS, Hu, Wu)


# ------------------------------- parameter prep --------------------------------
def _bias_col(b):
    return jnp.asarray(np.asarray(b, np.float32).reshape(-1, 1))


def _flatten_w(w_hwio, cin_pad=None):
    """(K,K,Cin,Cout) HWIO -> (Cout, K*K*Cin) bf16, columns ordered (kh,kw,cin)
    to match the in-kernel patch concatenation order (tap-major, channel-minor)."""
    w = np.asarray(w_hwio, np.float32)
    K, _, Cin, Cout = w.shape
    if cin_pad is not None and cin_pad > Cin:
        w = np.pad(w, ((0, 0), (0, 0), (0, cin_pad - Cin), (0, 0)))
        Cin = cin_pad
    return jnp.asarray(w.reshape(K * K * Cin, Cout).T, jnp.bfloat16)


def _build_subpixel_tail(tail_w_hwio, tail_b, mean):
    """Fold PixelShuffle(2) + 3x3 tail conv + add_mean into one matmul over the
    low-res up-conv map.  Returns ((12, 9*C_UP) bf16 weight, (12, 1) f32 bias);
    output rows ordered o*4 + a*2 + b."""
    K, r, C = KSIZE, SCALE, C_FEAT
    Wt = np.transpose(np.asarray(tail_w_hwio, np.float32), (3, 2, 0, 1))  # (o,c,kh,kw)
    W = np.zeros((N_COLORS, r, r, K * K, C_UP), np.float32)               # (o,a,b,tap,c4)
    for a in range(r):
        for kh in range(K):
            m = a + kh - 1
            i = m % r                      # sub-pixel row parity of the read
            dy = (m - i) // r              # low-res row offset in {-1, 0, 1}
            for b in range(r):
                for kw in range(K):
                    mm = b + kw - 1
                    j = mm % r
                    dx = (mm - j) // r
                    tap = (dy + 1) * K + (dx + 1)
                    # shuffled channel of `up` for (feat c, offset (i,j)) = c*4 + i*2 + j
                    W[:, a, b, tap, (i * r + j)::r * r] += Wt[:, :, kh, kw]
    w_flat = W.reshape(N_COLORS * r * r, K * K * C_UP)
    b_flat = np.repeat(np.asarray(tail_b, np.float32) + mean, r * r).reshape(-1, 1)
    return jnp.asarray(w_flat, jnp.bfloat16), jnp.asarray(b_flat, jnp.float32)


def prepare_params(params):
    """Host-side (eager) weight preparation: flatten convs for im2col matmuls,
    cast weights to bf16, fold PixelShuffle+tail+add_mean into one weight."""
    mean = RGB_MEAN * RGB_RANGE
    pf = {"head_w": _flatten_w(params["head_w"], cin_pad=CIN_PAD),
          "head_b": _bias_col(params["head_b"])}
    for i in range(N_RESBLOCKS):
        pf[f"body{i}_w1"] = _flatten_w(params[f"body{i}_w1"])
        pf[f"body{i}_b1"] = _bias_col(params[f"body{i}_b1"])
        pf[f"body{i}_w2"] = _flatten_w(params[f"body{i}_w2"])
        pf[f"body{i}_b2"] = _bias_col(params[f"body{i}_b2"])
    pf["up_w"] = _flatten_w(params["up_w"])
    pf["up_b"] = _bias_col(params["up_b"])
    pf["tail_w"], pf["tail_b"] = _build_subpixel_tail(
        params["tail_w"], params["tail_b"], mean)
    return pf


# ------------------------- pure-XLA reference (for checks) ----------------------
def _ref_conv(x, w_hwio, b):
    w = jnp.transpose(w_hwio, (3, 2, 0, 1))                    # OIHW
    y = jax.lax.conv_general_dilated(
        x, w, window_strides=(1, 1), padding="SAME",
        dimension_numbers=("NCHW", "OIHW", "NCHW"))
    return y + b.reshape(1, -1, 1, 1)


def reference_forward(x_nchw, params):
    mean = (jnp.asarray(RGB_MEAN) * RGB_RANGE).reshape(1, N_COLORS, 1, 1)
    x = x_nchw - mean
    x = _ref_conv(x, params["head_w"], params["head_b"])
    res = x
    for i in range(N_RESBLOCKS):
        h = jax.nn.relu(_ref_conv(res, params[f"body{i}_w1"], params[f"body{i}_b1"]))
        h = _ref_conv(h, params[f"body{i}_w2"], params[f"body{i}_b2"])
        res = res + RES_SCALE * h
    res = res + x
    t = _ref_conv(res, params["up_w"], params["up_b"])
    N, C4, H, W = t.shape
    C = C4 // (SCALE * SCALE)
    t = t.reshape(N, C, SCALE, SCALE, H, W)
    t = jnp.transpose(t, (0, 1, 4, 2, 5, 3)).reshape(N, C, H * SCALE, W * SCALE)
    t = _ref_conv(t, params["tail_w"], params["tail_b"])
    return t + mean


# --------------------------- deterministic init --------------------------------
def init_conv(key, k, cin, cout):
    kw, kb = jax.random.split(key)
    s = 1.0 / np.sqrt(k * k * cin)
    w = jax.random.uniform(kw, (k, k, cin, cout), jnp.float32, -s, s)
    b = jax.random.uniform(kb, (cout,), jnp.float32, -s, s)
    return w, b


def init_params(key):
    params = {}
    key, k = jax.random.split(key)
    params["head_w"], params["head_b"] = init_conv(k, KSIZE, N_COLORS, C_FEAT)
    for i in range(N_RESBLOCKS):
        key, k1 = jax.random.split(key)
        key, k2 = jax.random.split(key)
        params[f"body{i}_w1"], params[f"body{i}_b1"] = init_conv(k1, KSIZE, C_FEAT, C_FEAT)
        params[f"body{i}_w2"], params[f"body{i}_b2"] = init_conv(k2, KSIZE, C_FEAT, C_FEAT)
    key, k = jax.random.split(key)
    params["up_w"], params["up_b"] = init_conv(k, KSIZE, C_FEAT, C_UP)
    key, k = jax.random.split(key)
    params["tail_w"], params["tail_b"] = init_conv(k, KSIZE, C_FEAT, N_COLORS)
    return params


# ------------------------------------ main -------------------------------------
if __name__ == "__main__":
    root = jax.random.PRNGKey(0)
    k_in, k_par = jax.random.split(root)

    # Input in PyTorch NCHW convention: (batch, n_colors, H, W) in [0, rgb_range]
    x = jax.random.uniform(k_in, (2, N_COLORS, 16, 16), jnp.float32) * RGB_RANGE
    params = init_params(k_par)
    pf = prepare_params(params)            # host-side, once per model

    fwd = jax.jit(edsr_plus_forward)
    out = jax.block_until_ready(fwd(x, pf))

    expected = (2, N_COLORS, 16 * SCALE, 16 * SCALE)
    assert out.shape == expected, (out.shape, expected)
    assert out.dtype == jnp.float32
    assert bool(jnp.all(jnp.isfinite(out)))

    # Sanity check against a pure-XLA conv reference (loose tolerance: the
    # kernel feeds the MXU bf16 inputs with f32 accumulation).
    ref = jax.block_until_ready(jax.jit(reference_forward)(x, params))
    err = float(jnp.max(jnp.abs(out - ref)))
    scale = float(jnp.max(jnp.abs(ref))) + 1e-6
    assert err <= 5e-2 * scale, ("mismatch vs reference", err, scale)

    print("KERNEL_OK")
</pallas_src>

<mosaic_0001>
module attributes {stable_mosaic.version = 11 : i64} {
  func.func @kernel(%arg0: i32, %arg1: memref<1x8x256xf32, #tpu.memory_space<vmem>>, %arg2: memref<8x1xf32, #tpu.memory_space<vmem>>, %arg3: memref<72x256xf32, #tpu.memory_space<vmem>>, %arg4: memref<288x256xf32, #tpu.memory_space<vmem>>, %arg5: memref<8x72xbf16, #tpu.memory_space<vmem>>, %arg6: memref<8x1xf32, #tpu.memory_space<vmem>>, %arg7: memref<8x72xbf16, #tpu.memory_space<vmem>>, %arg8: memref<8x1xf32, #tpu.memory_space<vmem>>, %arg9: memref<8x72xbf16, #tpu.memory_space<vmem>>, %arg10: memref<8x1xf32, #tpu.memory_space<vmem>>, %arg11: memref<8x72xbf16, #tpu.memory_space<vmem>>, %arg12: memref<8x1xf32, #tpu.memory_space<vmem>>, %arg13: memref<8x72xbf16, #tpu.memory_space<vmem>>, %arg14: memref<8x1xf32, #tpu.memory_space<vmem>>, %arg15: memref<32x72xbf16, #tpu.memory_space<vmem>>, %arg16: memref<32x1xf32, #tpu.memory_space<vmem>>, %arg17: memref<12x288xbf16, #tpu.memory_space<vmem>>, %arg18: memref<12x1xf32, #tpu.memory_space<vmem>>, %arg19: memref<1x12x256xf32, #tpu.memory_space<vmem>>) attributes {dimension_semantics = [#tpu.dimension_semantics<parallel>], iteration_bounds = array<i64: 2>, scalar_prefetch = 0 : i64, scratch_operands = 0 : i64, tpu.core_type = #tpu.core_type<tc>, window_params = [{transform_indices = @transform_0, window_bounds = array<i64: 1, 8, 256>}, {pipeline_mode = #tpu.pipeline_mode<synchronous>, transform_indices = @transform_1, window_bounds = array<i64: 8, 1>}, {pipeline_mode = #tpu.pipeline_mode<synchronous>, transform_indices = @transform_2, window_bounds = array<i64: 72, 256>}, {pipeline_mode = #tpu.pipeline_mode<synchronous>, transform_indices = @transform_3, window_bounds = array<i64: 288, 256>}, {pipeline_mode = #tpu.pipeline_mode<synchronous>, transform_indices = @transform_4, window_bounds = array<i64: 8, 72>}, {pipeline_mode = #tpu.pipeline_mode<synchronous>, transform_indices = @transform_5, window_bounds = array<i64: 8, 1>}, {pipeline_mode = #tpu.pipeline_mode<synchronous>, transform_indices = @transform_6, window_bounds = array<i64: 8, 72>}, {pipeline_mode = #tpu.pipeline_mode<synchronous>, transform_indices = @transform_7, window_bounds = array<i64: 8, 1>}, {pipeline_mode = #tpu.pipeline_mode<synchronous>, transform_indices = @transform_8, window_bounds = array<i64: 8, 72>}, {pipeline_mode = #tpu.pipeline_mode<synchronous>, transform_indices = @transform_9, window_bounds = array<i64: 8, 1>}, {pipeline_mode = #tpu.pipeline_mode<synchronous>, transform_indices = @transform_10, window_bounds = array<i64: 8, 72>}, {pipeline_mode = #tpu.pipeline_mode<synchronous>, transform_indices = @transform_11, window_bounds = array<i64: 8, 1>}, {pipeline_mode = #tpu.pipeline_mode<synchronous>, transform_indices = @transform_12, window_bounds = array<i64: 8, 72>}, {pipeline_mode = #tpu.pipeline_mode<synchronous>, transform_indices = @transform_13, window_bounds = array<i64: 8, 1>}, {pipeline_mode = #tpu.pipeline_mode<synchronous>, transform_indices = @transform_14, window_bounds = array<i64: 32, 72>}, {pipeline_mode = #tpu.pipeline_mode<synchronous>, transform_indices = @transform_15, window_bounds = array<i64: 32, 1>}, {pipeline_mode = #tpu.pipeline_mode<synchronous>, transform_indices = @transform_16, window_bounds = array<i64: 12, 288>}, {pipeline_mode = #tpu.pipeline_mode<synchronous>, transform_indices = @transform_17, window_bounds = array<i64: 12, 1>}, {transform_indices = @transform_18, window_bounds = array<i64: 1, 12, 256>}]} {
    %c0 = arith.constant 0 : index
    %c0_0 = arith.constant 0 : index
    %0 = vector.load %arg3[%c0, %c0_0] : memref<72x256xf32, #tpu.memory_space<vmem>>, vector<72x256xf32>
    %c0_1 = arith.constant 0 : index
    %c0_2 = arith.constant 0 : index
    %1 = vector.load %arg4[%c0_1, %c0_2] : memref<288x256xf32, #tpu.memory_space<vmem>>, vector<288x256xf32>
    %c0_3 = arith.constant 0 : index
    %c0_4 = arith.constant 0 : index
    %c0_5 = arith.constant 0 : index
    %2 = vector.load %arg1[%c0_3, %c0_4, %c0_5] : memref<1x8x256xf32, #tpu.memory_space<vmem>>, vector<1x8x256xf32>
    %3 = vector.shape_cast %2 : vector<1x8x256xf32> to vector<8x256xf32>
    %c0_6 = arith.constant 0 : index
    %c0_7 = arith.constant 0 : index
    %4 = vector.load %arg2[%c0_6, %c0_7] : memref<8x1xf32, #tpu.memory_space<vmem>>, vector<8x1xf32>
    %5 = vector.broadcast %4 : vector<8x1xf32> to vector<8x256xf32>
    %6 = arith.subf %3, %5 : vector<8x256xf32>
    %c17_i32 = arith.constant 17 : i32
    %7 = tpu.dynamic_rotate %6 by %c17_i32 dim 1 : vector<8x256xf32>, i32 -> vector<8x256xf32>
    %c16_i32 = arith.constant 16 : i32
    %8 = tpu.dynamic_rotate %6 by %c16_i32 dim 1 : vector<8x256xf32>, i32 -> vector<8x256xf32>
    %c15_i32 = arith.constant 15 : i32
    %9 = tpu.dynamic_rotate %6 by %c15_i32 dim 1 : vector<8x256xf32>, i32 -> vector<8x256xf32>
    %c1_i32 = arith.constant 1 : i32
    %10 = tpu.dynamic_rotate %6 by %c1_i32 dim 1 : vector<8x256xf32>, i32 -> vector<8x256xf32>
    %c255_i32 = arith.constant 255 : i32
    %11 = tpu.dynamic_rotate %6 by %c255_i32 dim 1 : vector<8x256xf32>, i32 -> vector<8x256xf32>
    %c241_i32 = arith.constant 241 : i32
    %12 = tpu.dynamic_rotate %6 by %c241_i32 dim 1 : vector<8x256xf32>, i32 -> vector<8x256xf32>
    %c240_i32 = arith.constant 240 : i32
    %13 = tpu.dynamic_rotate %6 by %c240_i32 dim 1 : vector<8x256xf32>, i32 -> vector<8x256xf32>
    %c239_i32 = arith.constant 239 : i32
    %14 = tpu.dynamic_rotate %6 by %c239_i32 dim 1 : vector<8x256xf32>, i32 -> vector<8x256xf32>
    %15 = tpu.concatenate %7, %8, %9, %10, %6, %11, %12, %13, %14 in 0 : vector<8x256xf32>, vector<8x256xf32>, vector<8x256xf32>, vector<8x256xf32>, vector<8x256xf32>, vector<8x256xf32>, vector<8x256xf32>, vector<8x256xf32>, vector<8x256xf32> -> vector<72x256xf32>
    %16 = arith.mulf %15, %0 : vector<72x256xf32>
    %17 = arith.truncf %16 : vector<72x256xf32> to vector<72x256xbf16>
    %c0_8 = arith.constant 0 : index
    %c0_9 = arith.constant 0 : index
    %18 = vector.load %arg5[%c0_8, %c0_9] : memref<8x72xbf16, #tpu.memory_space<vmem>>, vector<8x72xbf16>
    %cst = arith.constant dense<0.000000e+00> : vector<8x256xf32>
    %19 = tpu.matmul %18, %17, %cst {dimension_numbers = #tpu.dot_dimension_numbers<[1], [0], [0], [1], [0, 0, 1, 1], [], []>} : vector<8x72xbf16>, vector<72x256xbf16>, vector<8x256xf32> -> vector<8x256xf32>
    %c0_10 = arith.constant 0 : index
    %c0_11 = arith.constant 0 : index
    %20 = vector.load %arg6[%c0_10, %c0_11] : memref<8x1xf32, #tpu.memory_space<vmem>>, vector<8x1xf32>
    %21 = vector.broadcast %20 : vector<8x1xf32> to vector<8x256xf32>
    %22 = arith.addf %19, %21 : vector<8x256xf32>
    %c17_i32_12 = arith.constant 17 : i32
    %23 = tpu.dynamic_rotate %22 by %c17_i32_12 dim 1 : vector<8x256xf32>, i32 -> vector<8x256xf32>
    %c16_i32_13 = arith.constant 16 : i32
    %24 = tpu.dynamic_rotate %22 by %c16_i32_13 dim 1 : vector<8x256xf32>, i32 -> vector<8x256xf32>
    %c15_i32_14 = arith.constant 15 : i32
    %25 = tpu.dynamic_rotate %22 by %c15_i32_14 dim 1 : vector<8x256xf32>, i32 -> vector<8x256xf32>
    %c1_i32_15 = arith.constant 1 : i32
    %26 = tpu.dynamic_rotate %22 by %c1_i32_15 dim 1 : vector<8x256xf32>, i32 -> vector<8x256xf32>
    %c255_i32_16 = arith.constant 255 : i32
    %27 = tpu.dynamic_rotate %22 by %c255_i32_16 dim 1 : vector<8x256xf32>, i32 -> vector<8x256xf32>
    %c241_i32_17 = arith.constant 241 : i32
    %28 = tpu.dynamic_rotate %22 by %c241_i32_17 dim 1 : vector<8x256xf32>, i32 -> vector<8x256xf32>
    %c240_i32_18 = arith.constant 240 : i32
    %29 = tpu.dynamic_rotate %22 by %c240_i32_18 dim 1 : vector<8x256xf32>, i32 -> vector<8x256xf32>
    %c239_i32_19 = arith.constant 239 : i32
    %30 = tpu.dynamic_rotate %22 by %c239_i32_19 dim 1 : vector<8x256xf32>, i32 -> vector<8x256xf32>
    %31 = tpu.concatenate %23, %24, %25, %26, %22, %27, %28, %29, %30 in 0 : vector<8x256xf32>, vector<8x256xf32>, vector<8x256xf32>, vector<8x256xf32>, vector<8x256xf32>, vector<8x256xf32>, vector<8x256xf32>, vector<8x256xf32>, vector<8x256xf32> -> vector<72x256xf32>
    %32 = arith.mulf %31, %0 : vector<72x256xf32>
    %33 = arith.truncf %32 : vector<72x256xf32> to vector<72x256xbf16>
    %c0_20 = arith.constant 0 : index
    %c0_21 = arith.constant 0 : index
    %34 = vector.load %arg7[%c0_20, %c0_21] : memref<8x72xbf16, #tpu.memory_space<vmem>>, vector<8x72xbf16>
    %cst_22 = arith.constant dense<0.000000e+00> : vector<8x256xf32>
    %35 = tpu.matmul %34, %33, %cst_22 {dimension_numbers = #tpu.dot_dimension_numbers<[1], [0], [0], [1], [0, 0, 1, 1], [], []>} : vector<8x72xbf16>, vector<72x256xbf16>, vector<8x256xf32> -> vector<8x256xf32>
    %c0_23 = arith.constant 0 : index
    %c0_24 = arith.constant 0 : index
    %36 = vector.load %arg8[%c0_23, %c0_24] : memref<8x1xf32, #tpu.memory_space<vmem>>, vector<8x1xf32>
    %37 = vector.broadcast %36 : vector<8x1xf32> to vector<8x256xf32>
    %38 = arith.addf %35, %37 : vector<8x256xf32>
    %cst_25 = arith.constant 0.000000e+00 : f32
    %39 = vector.broadcast %cst_25 : f32 to vector<8x256xf32>
    %40 = arith.maximumf %38, %39 : vector<8x256xf32>
    %c17_i32_26 = arith.constant 17 : i32
    %41 = tpu.dynamic_rotate %40 by %c17_i32_26 dim 1 : vector<8x256xf32>, i32 -> vector<8x256xf32>
    %c16_i32_27 = arith.constant 16 : i32
    %42 = tpu.dynamic_rotate %40 by %c16_i32_27 dim 1 : vector<8x256xf32>, i32 -> vector<8x256xf32>
    %c15_i32_28 = arith.constant 15 : i32
    %43 = tpu.dynamic_rotate %40 by %c15_i32_28 dim 1 : vector<8x256xf32>, i32 -> vector<8x256xf32>
    %c1_i32_29 = arith.constant 1 : i32
    %44 = tpu.dynamic_rotate %40 by %c1_i32_29 dim 1 : vector<8x256xf32>, i32 -> vector<8x256xf32>
    %c255_i32_30 = arith.constant 255 : i32
    %45 = tpu.dynamic_rotate %40 by %c255_i32_30 dim 1 : vector<8x256xf32>, i32 -> vector<8x256xf32>
    %c241_i32_31 = arith.constant 241 : i32
    %46 = tpu.dynamic_rotate %40 by %c241_i32_31 dim 1 : vector<8x256xf32>, i32 -> vector<8x256xf32>
    %c240_i32_32 = arith.constant 240 : i32
    %47 = tpu.dynamic_rotate %40 by %c240_i32_32 dim 1 : vector<8x256xf32>, i32 -> vector<8x256xf32>
    %c239_i32_33 = arith.constant 239 : i32
    %48 = tpu.dynamic_rotate %40 by %c239_i32_33 dim 1 : vector<8x256xf32>, i32 -> vector<8x256xf32>
    %49 = tpu.concatenate %41, %42, %43, %44, %40, %45, %46, %47, %48 in 0 : vector<8x256xf32>, vector<8x256xf32>, vector<8x256xf32>, vector<8x256xf32>, vector<8x256xf32>, vector<8x256xf32>, vector<8x256xf32>, vector<8x256xf32>, vector<8x256xf32> -> vector<72x256xf32>
    %50 = arith.mulf %49, %0 : vector<72x256xf32>
    %51 = arith.truncf %50 : vector<72x256xf32> to vector<72x256xbf16>
    %c0_34 = arith.constant 0 : index
    %c0_35 = arith.constant 0 : index
    %52 = vector.load %arg9[%c0_34, %c0_35] : memref<8x72xbf16, #tpu.memory_space<vmem>>, vector<8x72xbf16>
    %cst_36 = arith.constant dense<0.000000e+00> : vector<8x256xf32>
    %53 = tpu.matmul %52, %51, %cst_36 {dimension_numbers = #tpu.dot_dimension_numbers<[1], [0], [0], [1], [0, 0, 1, 1], [], []>} : vector<8x72xbf16>, vector<72x256xbf16>, vector<8x256xf32> -> vector<8x256xf32>
    %c0_37 = arith.constant 0 : index
    %c0_38 = arith.constant 0 : index
    %54 = vector.load %arg10[%c0_37, %c0_38] : memref<8x1xf32, #tpu.memory_space<vmem>>, vector<8x1xf32>
    %55 = vector.broadcast %54 : vector<8x1xf32> to vector<8x256xf32>
    %56 = arith.addf %53, %55 : vector<8x256xf32>
    %57 = arith.addf %22, %56 : vector<8x256xf32>
    %c17_i32_39 = arith.constant 17 : i32
    %58 = tpu.dynamic_rotate %57 by %c17_i32_39 dim 1 : vector<8x256xf32>, i32 -> vector<8x256xf32>
    %c16_i32_40 = arith.constant 16 : i32
    %59 = tpu.dynamic_rotate %57 by %c16_i32_40 dim 1 : vector<8x256xf32>, i32 -> vector<8x256xf32>
    %c15_i32_41 = arith.constant 15 : i32
    %60 = tpu.dynamic_rotate %57 by %c15_i32_41 dim 1 : vector<8x256xf32>, i32 -> vector<8x256xf32>
    %c1_i32_42 = arith.constant 1 : i32
    %61 = tpu.dynamic_rotate %57 by %c1_i32_42 dim 1 : vector<8x256xf32>, i32 -> vector<8x256xf32>
    %c255_i32_43 = arith.constant 255 : i32
    %62 = tpu.dynamic_rotate %57 by %c255_i32_43 dim 1 : vector<8x256xf32>, i32 -> vector<8x256xf32>
    %c241_i32_44 = arith.constant 241 : i32
    %63 = tpu.dynamic_rotate %57 by %c241_i32_44 dim 1 : vector<8x256xf32>, i32 -> vector<8x256xf32>
    %c240_i32_45 = arith.constant 240 : i32
    %64 = tpu.dynamic_rotate %57 by %c240_i32_45 dim 1 : vector<8x256xf32>, i32 -> vector<8x256xf32>
    %c239_i32_46 = arith.constant 239 : i32
    %65 = tpu.dynamic_rotate %57 by %c239_i32_46 dim 1 : vector<8x256xf32>, i32 -> vector<8x256xf32>
    %66 = tpu.concatenate %58, %59, %60, %61, %57, %62, %63, %64, %65 in 0 : vector<8x256xf32>, vector<8x256xf32>, vector<8x256xf32>, vector<8x256xf32>, vector<8x256xf32>, vector<8x256xf32>, vector<8x256xf32>, vector<8x256xf32>, vector<8x256xf32> -> vector<72x256xf32>
    %67 = arith.mulf %66, %0 : vector<72x256xf32>
    %68 = arith.truncf %67 : vector<72x256xf32> to vector<72x256xbf16>
    %c0_47 = arith.constant 0 : index
    %c0_48 = arith.constant 0 : index
    %69 = vector.load %arg11[%c0_47, %c0_48] : memref<8x72xbf16, #tpu.memory_space<vmem>>, vector<8x72xbf16>
    %cst_49 = arith.constant dense<0.000000e+00> : vector<8x256xf32>
    %70 = tpu.matmul %69, %68, %cst_49 {dimension_numbers = #tpu.dot_dimension_numbers<[1], [0], [0], [1], [0, 0, 1, 1], [], []>} : vector<8x72xbf16>, vector<72x256xbf16>, vector<8x256xf32> -> vector<8x256xf32>
    %c0_50 = arith.constant 0 : index
    %c0_51 = arith.constant 0 : index
    %71 = vector.load %arg12[%c0_50, %c0_51] : memref<8x1xf32, #tpu.memory_space<vmem>>, vector<8x1xf32>
    %72 = vector.broadcast %71 : vector<8x1xf32> to vector<8x256xf32>
    %73 = arith.addf %70, %72 : vector<8x256xf32>
    %cst_52 = arith.constant 0.000000e+00 : f32
    %74 = vector.broadcast %cst_52 : f32 to vector<8x256xf32>
    %75 = arith.maximumf %73, %74 : vector<8x256xf32>
    %c17_i32_53 = arith.constant 17 : i32
    %76 = tpu.dynamic_rotate %75 by %c17_i32_53 dim 1 : vector<8x256xf32>, i32 -> vector<8x256xf32>
    %c16_i32_54 = arith.constant 16 : i32
    %77 = tpu.dynamic_rotate %75 by %c16_i32_54 dim 1 : vector<8x256xf32>, i32 -> vector<8x256xf32>
    %c15_i32_55 = arith.constant 15 : i32
    %78 = tpu.dynamic_rotate %75 by %c15_i32_55 dim 1 : vector<8x256xf32>, i32 -> vector<8x256xf32>
    %c1_i32_56 = arith.constant 1 : i32
    %79 = tpu.dynamic_rotate %75 by %c1_i32_56 dim 1 : vector<8x256xf32>, i32 -> vector<8x256xf32>
    %c255_i32_57 = arith.constant 255 : i32
    %80 = tpu.dynamic_rotate %75 by %c255_i32_57 dim 1 : vector<8x256xf32>, i32 -> vector<8x256xf32>
    %c241_i32_58 = arith.constant 241 : i32
    %81 = tpu.dynamic_rotate %75 by %c241_i32_58 dim 1 : vector<8x256xf32>, i32 -> vector<8x256xf32>
    %c240_i32_59 = arith.constant 240 : i32
    %82 = tpu.dynamic_rotate %75 by %c240_i32_59 dim 1 : vector<8x256xf32>, i32 -> vector<8x256xf32>
    %c239_i32_60 = arith.constant 239 : i32
    %83 = tpu.dynamic_rotate %75 by %c239_i32_60 dim 1 : vector<8x256xf32>, i32 -> vector<8x256xf32>
    %84 = tpu.concatenate %76, %77, %78, %79, %75, %80, %81, %82, %83 in 0 : vector<8x256xf32>, vector<8x256xf32>, vector<8x256xf32>, vector<8x256xf32>, vector<8x256xf32>, vector<8x256xf32>, vector<8x256xf32>, vector<8x256xf32>, vector<8x256xf32> -> vector<72x256xf32>
    %85 = arith.mulf %84, %0 : vector<72x256xf32>
    %86 = arith.truncf %85 : vector<72x256xf32> to vector<72x256xbf16>
    %c0_61 = arith.constant 0 : index
    %c0_62 = arith.constant 0 : index
    %87 = vector.load %arg13[%c0_61, %c0_62] : memref<8x72xbf16, #tpu.memory_space<vmem>>, vector<8x72xbf16>
    %cst_63 = arith.constant dense<0.000000e+00> : vector<8x256xf32>
    %88 = tpu.matmul %87, %86, %cst_63 {dimension_numbers = #tpu.dot_dimension_numbers<[1], [0], [0], [1], [0, 0, 1, 1], [], []>} : vector<8x72xbf16>, vector<72x256xbf16>, vector<8x256xf32> -> vector<8x256xf32>
    %c0_64 = arith.constant 0 : index
    %c0_65 = arith.constant 0 : index
    %89 = vector.load %arg14[%c0_64, %c0_65] : memref<8x1xf32, #tpu.memory_space<vmem>>, vector<8x1xf32>
    %90 = vector.broadcast %89 : vector<8x1xf32> to vector<8x256xf32>
    %91 = arith.addf %88, %90 : vector<8x256xf32>
    %92 = arith.addf %57, %91 : vector<8x256xf32>
    %93 = arith.addf %92, %22 : vector<8x256xf32>
    %c17_i32_66 = arith.constant 17 : i32
    %94 = tpu.dynamic_rotate %93 by %c17_i32_66 dim 1 : vector<8x256xf32>, i32 -> vector<8x256xf32>
    %c16_i32_67 = arith.constant 16 : i32
    %95 = tpu.dynamic_rotate %93 by %c16_i32_67 dim 1 : vector<8x256xf32>, i32 -> vector<8x256xf32>
    %c15_i32_68 = arith.constant 15 : i32
    %96 = tpu.dynamic_rotate %93 by %c15_i32_68 dim 1 : vector<8x256xf32>, i32 -> vector<8x256xf32>
    %c1_i32_69 = arith.constant 1 : i32
    %97 = tpu.dynamic_rotate %93 by %c1_i32_69 dim 1 : vector<8x256xf32>, i32 -> vector<8x256xf32>
    %c255_i32_70 = arith.constant 255 : i32
    %98 = tpu.dynamic_rotate %93 by %c255_i32_70 dim 1 : vector<8x256xf32>, i32 -> vector<8x256xf32>
    %c241_i32_71 = arith.constant 241 : i32
    %99 = tpu.dynamic_rotate %93 by %c241_i32_71 dim 1 : vector<8x256xf32>, i32 -> vector<8x256xf32>
    %c240_i32_72 = arith.constant 240 : i32
    %100 = tpu.dynamic_rotate %93 by %c240_i32_72 dim 1 : vector<8x256xf32>, i32 -> vector<8x256xf32>
    %c239_i32_73 = arith.constant 239 : i32
    %101 = tpu.dynamic_rotate %93 by %c239_i32_73 dim 1 : vector<8x256xf32>, i32 -> vector<8x256xf32>
    %102 = tpu.concatenate %94, %95, %96, %97, %93, %98, %99, %100, %101 in 0 : vector<8x256xf32>, vector<8x256xf32>, vector<8x256xf32>, vector<8x256xf32>, vector<8x256xf32>, vector<8x256xf32>, vector<8x256xf32>, vector<8x256xf32>, vector<8x256xf32> -> vector<72x256xf32>
    %103 = arith.mulf %102, %0 : vector<72x256xf32>
    %104 = arith.truncf %103 : vector<72x256xf32> to vector<72x256xbf16>
    %c0_74 = arith.constant 0 : index
    %c0_75 = arith.constant 0 : index
    %105 = vector.load %arg15[%c0_74, %c0_75] : memref<32x72xbf16, #tpu.memory_space<vmem>>, vector<32x72xbf16>
    %cst_76 = arith.constant dense<0.000000e+00> : vector<32x256xf32>
    %106 = tpu.matmul %105, %104, %cst_76 {dimension_numbers = #tpu.dot_dimension_numbers<[1], [0], [0], [1], [0, 0, 1, 1], [], []>} : vector<32x72xbf16>, vector<72x256xbf16>, vector<32x256xf32> -> vector<32x256xf32>
    %c0_77 = arith.constant 0 : index
    %c0_78 = arith.constant 0 : index
    %107 = vector.load %arg16[%c0_77, %c0_78] : memref<32x1xf32, #tpu.memory_space<vmem>>, vector<32x1xf32>
    %108 = vector.broadcast %107 : vector<32x1xf32> to vector<32x256xf32>
    %109 = arith.addf %106, %108 : vector<32x256xf32>
    %c17_i32_79 = arith.constant 17 : i32
    %110 = tpu.dynamic_rotate %109 by %c17_i32_79 dim 1 : vector<32x256xf32>, i32 -> vector<32x256xf32>
    %c16_i32_80 = arith.constant 16 : i32
    %111 = tpu.dynamic_rotate %109 by %c16_i32_80 dim 1 : vector<32x256xf32>, i32 -> vector<32x256xf32>
    %c15_i32_81 = arith.constant 15 : i32
    %112 = tpu.dynamic_rotate %109 by %c15_i32_81 dim 1 : vector<32x256xf32>, i32 -> vector<32x256xf32>
    %c1_i32_82 = arith.constant 1 : i32
    %113 = tpu.dynamic_rotate %109 by %c1_i32_82 dim 1 : vector<32x256xf32>, i32 -> vector<32x256xf32>
    %c255_i32_83 = arith.constant 255 : i32
    %114 = tpu.dynamic_rotate %109 by %c255_i32_83 dim 1 : vector<32x256xf32>, i32 -> vector<32x256xf32>
    %c241_i32_84 = arith.constant 241 : i32
    %115 = tpu.dynamic_rotate %109 by %c241_i32_84 dim 1 : vector<32x256xf32>, i32 -> vector<32x256xf32>
    %c240_i32_85 = arith.constant 240 : i32
    %116 = tpu.dynamic_rotate %109 by %c240_i32_85 dim 1 : vector<32x256xf32>, i32 -> vector<32x256xf32>
    %c239_i32_86 = arith.constant 239 : i32
    %117 = tpu.dynamic_rotate %109 by %c239_i32_86 dim 1 : vector<32x256xf32>, i32 -> vector<32x256xf32>
    %118 = tpu.concatenate %110, %111, %112, %113, %109, %114, %115, %116, %117 in 0 : vector<32x256xf32>, vector<32x256xf32>, vector<32x256xf32>, vector<32x256xf32>, vector<32x256xf32>, vector<32x256xf32>, vector<32x256xf32>, vector<32x256xf32>, vector<32x256xf32> -> vector<288x256xf32>
    %119 = arith.mulf %118, %1 : vector<288x256xf32>
    %120 = arith.truncf %119 : vector<288x256xf32> to vector<288x256xbf16>
    %c0_87 = arith.constant 0 : index
    %c0_88 = arith.constant 0 : index
    %121 = vector.load %arg17[%c0_87, %c0_88] : memref<12x288xbf16, #tpu.memory_space<vmem>>, vector<12x288xbf16>
    %cst_89 = arith.constant dense<0.000000e+00> : vector<12x256xf32>
    %122 = tpu.matmul %121, %120, %cst_89 {dimension_numbers = #tpu.dot_dimension_numbers<[1], [0], [0], [1], [0, 0, 1, 1], [], []>} : vector<12x288xbf16>, vector<288x256xbf16>, vector<12x256xf32> -> vector<12x256xf32>
    %c0_90 = arith.constant 0 : index
    %c0_91 = arith.constant 0 : index
    %123 = vector.load %arg18[%c0_90, %c0_91] : memref<12x1xf32, #tpu.memory_space<vmem>>, vector<12x1xf32>
    %124 = vector.broadcast %123 : vector<12x1xf32> to vector<12x256xf32>
    %125 = arith.addf %122, %124 : vector<12x256xf32>
    %c0_92 = arith.constant 0 : index
    %c0_93 = arith.constant 0 : index
    %c0_94 = arith.constant 0 : index
    %126 = vector.load %arg19[%c0_92, %c0_93, %c0_94] : memref<1x12x256xf32, #tpu.memory_space<vmem>>, vector<1x12x256xf32>
    %127 = vector.shape_cast %126 : vector<1x12x256xf32> to vector<12x256xf32>
    %128 = vector.shape_cast %125 : vector<12x256xf32> to vector<1x12x256xf32>
    tpu.vector_store %arg19[%c0_92, %c0_93, %c0_94], %128 {strides = array<i32>} : memref<1x12x256xf32, #tpu.memory_space<vmem>>, vector<1x12x256xf32>,
    return
  }
  func.func @transform_0(%arg0: i32) -> (i32, i32, i32) {
    %c0_i32 = arith.constant 0 : i32
    %c0_i32_0 = arith.constant 0 : i32
    %c0_i32_1 = arith.constant 0 : i32
    return %arg0, %c0_i32, %c0_i32_0 : i32, i32, i32
  }
  func.func @transform_1(%arg0: i32) -> (i32, i32) {
    %c0_i32 = arith.constant 0 : i32
    %c0_i32_0 = arith.constant 0 : i32
    %c0_i32_1 = arith.constant 0 : i32
    return %c0_i32, %c0_i32_0 : i32, i32
  }
  func.func @transform_2(%arg0: i32) -> (i32, i32) {
    %c0_i32 = arith.constant 0 : i32
    %c0_i32_0 = arith.constant 0 : i32
    %c0_i32_1 = arith.constant 0 : i32
    return %c0_i32, %c0_i32_0 : i32, i32
  }
  func.func @transform_3(%arg0: i32) -> (i32, i32) {
    %c0_i32 = arith.constant 0 : i32
    %c0_i32_0 = arith.constant 0 : i32
    %c0_i32_1 = arith.constant 0 : i32
    return %c0_i32, %c0_i32_0 : i32, i32
  }
  func.func @transform_4(%arg0: i32) -> (i32, i32) {
    %c0_i32 = arith.constant 0 : i32
    %c0_i32_0 = arith.constant 0 : i32
    %c0_i32_1 = arith.constant 0 : i32
    return %c0_i32, %c0_i32_0 : i32, i32
  }
  func.func @transform_5(%arg0: i32) -> (i32, i32) {
    %c0_i32 = arith.constant 0 : i32
    %c0_i32_0 = arith.constant 0 : i32
    %c0_i32_1 = arith.constant 0 : i32
    return %c0_i32, %c0_i32_0 : i32, i32
  }
  func.func @transform_6(%arg0: i32) -> (i32, i32) {
    %c0_i32 = arith.constant 0 : i32
    %c0_i32_0 = arith.constant 0 : i32
    %c0_i32_1 = arith.constant 0 : i32
    return %c0_i32, %c0_i32_0 : i32, i32
  }
  func.func @transform_7(%arg0: i32) -> (i32, i32) {
    %c0_i32 = arith.constant 0 : i32
    %c0_i32_0 = arith.constant 0 : i32
    %c0_i32_1 = arith.constant 0 : i32
    return %c0_i32, %c0_i32_0 : i32, i32
  }
  func.func @transform_8(%arg0: i32) -> (i32, i32) {
    %c0_i32 = arith.constant 0 : i32
    %c0_i32_0 = arith.constant 0 : i32
    %c0_i32_1 = arith.constant 0 : i32
    return %c0_i32, %c0_i32_0 : i32, i32
  }
  func.func @transform_9(%arg0: i32) -> (i32, i32) {
    %c0_i32 = arith.constant 0 : i32
    %c0_i32_0 = arith.constant 0 : i32
    %c0_i32_1 = arith.constant 0 : i32
    return %c0_i32, %c0_i32_0 : i32, i32
  }
  func.func @transform_10(%arg0: i32) -> (i32, i32) {
    %c0_i32 = arith.constant 0 : i32
    %c0_i32_0 = arith.constant 0 : i32
    %c0_i32_1 = arith.constant 0 : i32
    return %c0_i32, %c0_i32_0 : i32, i32
  }
  func.func @transform_11(%arg0: i32) -> (i32, i32) {
    %c0_i32 = arith.constant 0 : i32
    %c0_i32_0 = arith.constant 0 : i32
    %c0_i32_1 = arith.constant 0 : i32
    return %c0_i32, %c0_i32_0 : i32, i32
  }
  func.func @transform_12(%arg0: i32) -> (i32, i32) {
    %c0_i32 = arith.constant 0 : i32
    %c0_i32_0 = arith.constant 0 : i32
    %c0_i32_1 = arith.constant 0 : i32
    return %c0_i32, %c0_i32_0 : i32, i32
  }
  func.func @transform_13(%arg0: i32) -> (i32, i32) {
    %c0_i32 = arith.constant 0 : i32
    %c0_i32_0 = arith.constant 0 : i32
    %c0_i32_1 = arith.constant 0 : i32
    return %c0_i32, %c0_i32_0 : i32, i32
  }
  func.func @transform_14(%arg0: i32) -> (i32, i32) {
    %c0_i32 = arith.constant 0 : i32
    %c0_i32_0 = arith.constant 0 : i32
    %c0_i32_1 = arith.constant 0 : i32
    return %c0_i32, %c0_i32_0 : i32, i32
  }
  func.func @transform_15(%arg0: i32) -> (i32, i32) {
    %c0_i32 = arith.constant 0 : i32
    %c0_i32_0 = arith.constant 0 : i32
    %c0_i32_1 = arith.constant 0 : i32
    return %c0_i32, %c0_i32_0 : i32, i32
  }
  func.func @transform_16(%arg0: i32) -> (i32, i32) {
    %c0_i32 = arith.constant 0 : i32
    %c0_i32_0 = arith.constant 0 : i32
    %c0_i32_1 = arith.constant 0 : i32
    return %c0_i32, %c0_i32_0 : i32, i32
  }
  func.func @transform_17(%arg0: i32) -> (i32, i32) {
    %c0_i32 = arith.constant 0 : i32
    %c0_i32_0 = arith.constant 0 : i32
    %c0_i32_1 = arith.constant 0 : i32
    return %c0_i32, %c0_i32_0 : i32, i32
  }
  func.func @transform_18(%arg0: i32) -> (i32, i32, i32) {
    %c0_i32 = arith.constant 0 : i32
    %c0_i32_0 = arith.constant 0 : i32
    %c0_i32_1 = arith.constant 0 : i32
    return %arg0, %c0_i32, %c0_i32_0 : i32, i32, i32
  }
}

</mosaic_0001>

<llo_original>
// kernel: edsr_plus_forward.1
$region0: #{edsr_plus_forward.1}
  #allocation0 [shape = 'u32[]', space=smem, size = 0x4, offset = 0x4, fixed_abs, tag = 'smem constant byte address 0x4 - core index']
  #allocation1 [shape = 'u32[144,128]{1,0:T(1,128)}', space=vmem, size = 0x12000, scoped, tag = 'internal scratch']
  %s0 = inlined_call_operand.vmem [shape: f32[2,8,256], index: 0, kind: input, shape index: {}]
  %s1 = inlined_call_operand.hbm [shape: f32[8,1], index: 1, kind: input, shape index: {}]
  %s2 = inlined_call_operand.hbm [shape: f32[72,256], index: 2, kind: input, shape index: {}]
  %s3 = inlined_call_operand.hbm [shape: f32[288,256], index: 3, kind: input, shape index: {}]
  %s4 = inlined_call_operand.hbm [shape: bf16[8,72], index: 4, kind: input, shape index: {}]
  %s5 = inlined_call_operand.vmem [shape: f32[8,1], index: 5, kind: input, shape index: {}]
  %s6 = inlined_call_operand.hbm [shape: bf16[8,72], index: 6, kind: input, shape index: {}]
  %s7 = inlined_call_operand.vmem [shape: f32[8,1], index: 7, kind: input, shape index: {}]
  %s8 = inlined_call_operand.hbm [shape: bf16[8,72], index: 8, kind: input, shape index: {}]
  %s9 = inlined_call_operand.vmem [shape: f32[8,1], index: 9, kind: input, shape index: {}]
  %s10 = inlined_call_operand.hbm [shape: bf16[8,72], index: 10, kind: input, shape index: {}]
  %s11 = inlined_call_operand.vmem [shape: f32[8,1], index: 11, kind: input, shape index: {}]
  %s12 = inlined_call_operand.hbm [shape: bf16[8,72], index: 12, kind: input, shape index: {}]
  %s13 = inlined_call_operand.vmem [shape: f32[8,1], index: 13, kind: input, shape index: {}]
  %s14 = inlined_call_operand.hbm [shape: bf16[32,72], index: 14, kind: input, shape index: {}]
  %s15 = inlined_call_operand.vmem [shape: f32[32,1], index: 15, kind: input, shape index: {}]
  %s16 = inlined_call_operand.hbm [shape: bf16[12,288], index: 16, kind: input, shape index: {}]
  %s17 = inlined_call_operand.vmem [shape: f32[12,1], index: 17, kind: input, shape index: {}]
  %s18 = inlined_call_operand.vmem [shape: f32[2,12,256], index: 18, kind: output, shape index: {}]
  %s19 = sld [smem:[#allocation0]]
  $region145: #{edsr_plus_forward.1} parent=0
    _
  %s21 = ssub.s32 1, %s19
  %s22 = scalar_select 0, %s21, %s19
  $region1: #{edsr_plus_forward.1} parent=0
    #allocation2 [shape = 'u8[4096]{0}', space=vmem, size = 0x1000, scoped, tag = 'input window, operand 1, single buffered']
    #allocation3 [shape = 's32[2]{0}', space=sflag, size = 0x8, scoped, tag = 'scoped memory for edsr_plus_forward.1']
    #allocation4 [shape = 'u8[73728]{0}', space=vmem, size = 0x12000, scoped, tag = 'input window, operand 2, single buffered']
    #allocation5 [shape = 's32[1]{0}', space=sflag, size = 0x4, scoped, tag = 'scoped memory for edsr_plus_forward.1']
    #allocation6 [shape = 'u8[294912]{0}', space=vmem, size = 0x48000, scoped, tag = 'input window, operand 3, single buffered']
    #allocation7 [shape = 'u8[2048]{0}', space=vmem, size = 0x800, scoped, tag = 'input window, operand 4, single buffered']
    #allocation8 [shape = 's32[1]{0}', space=sflag, size = 0x4, scoped, tag = 'scoped memory for edsr_plus_forward.1']
    #allocation9 [shape = 'u8[2048]{0}', space=vmem, size = 0x800, scoped, tag = 'input window, operand 6, single buffered']
    #allocation10 [shape = 'u8[2048]{0}', space=vmem, size = 0x800, scoped, tag = 'input window, operand 8, single buffered']
    #allocation11 [shape = 's32[1]{0}', space=sflag, size = 0x4, scoped, tag = 'scoped memory for edsr_plus_forward.1']
    #allocation12 [shape = 'u8[2048]{0}', space=vmem, size = 0x800, scoped, tag = 'input window, operand 10, single buffered']
    #allocation13 [shape = 'u8[2048]{0}', space=vmem, size = 0x800, scoped, tag = 'input window, operand 12, single buffered']
    #allocation14 [shape = 's32[1]{0}', space=sflag, size = 0x4, scoped, tag = 'scoped memory for edsr_plus_forward.1']
    #allocation15 [shape = 'u8[8192]{0}', space=vmem, size = 0x2000, scoped, tag = 'input window, operand 14, single buffered']
    #allocation16 [shape = 'u8[12288]{0}', space=vmem, size = 0x3000, scoped, tag = 'input window, operand 16, single buffered']
    #allocation17 [shape = 's32[1]{0}', space=sflag, size = 0x4, scoped, tag = 'scoped memory for edsr_plus_forward.1']
    %23 = vsyncpa [#allocation3], 0
    %24 = vsyncpa [#allocation5], 0
    %25 = vsyncpa [#allocation8], 0
    %26 = vsyncpa [#allocation11], 0
    %27 = vsyncpa [#allocation14], 0
    %28 = vsyncpa [#allocation17], 0
    loop: start=0, step=1, limit=4
    $region2: #{edsr_plus_forward.1} parent=1 // loop_pre_header
      _
    $region3: #{edsr_plus_forward.1} parent=1 // loop_header
      %s30 = sphi 0, %s34
      %p31 = scmp.ge.s32.totalorder %s30, 4
      %s40 = sphi 0, %s42
      %s43 = sphi 0, %s40
      %s44 = sphi 0, %s43
      %s60 = sphi 0, %s44
      %s64 = sphi 0, %s64
      %s66 = sphi 0, %s64
      %s67 = sphi 0, %s66
      %s81 = sphi 0, %s67
      %s85 = sphi 0, %s85
      %s87 = sphi 0, %s85
      %s88 = sphi 0, %s87
      %s102 = sphi 0, %s88
      %s106 = sphi 0, %s106
      %s108 = sphi 0, %s106
      %s109 = sphi 0, %s108
      %s123 = sphi 0, %s109
      %s127 = sphi 0, %s127
      %s129 = sphi 0, %s127
      %s130 = sphi 0, %s129
      %s144 = sphi 0, %s130
      %s148 = sphi 0, %s148
      %s150 = sphi 0, %s148
      %s151 = sphi 0, %s150
      %s165 = sphi 0, %s151
      %s169 = sphi 0, %s169
      %s171 = sphi 0, %s169
      %s172 = sphi 0, %s171
      %s186 = sphi 0, %s172
      %s190 = sphi 0, %s190
      %s192 = sphi 0, %s190
      %s193 = sphi 0, %s192
      %s207 = sphi 0, %s193
      %s211 = sphi 0, %s211
      %s213 = sphi 0, %s211
      %s214 = sphi 0, %s213
      %s228 = sphi 0, %s214
      %s232 = sphi 0, %s232
      %s234 = sphi 0, %s232
      %s235 = sphi 0, %s234
      %s249 = sphi 0, %s235
      %s253 = sphi 0, %s253
      %s255 = sphi 0, %s253
      %s256 = sphi 0, %s255
      %s270 = sphi 0, %s256
      %s274 = sphi 0, %s274
      %s276 = sphi 0, %s274
      %s277 = sphi 0, %s276
      %s291 = sphi 0, %s277
      %s295 = sphi 0, %s295
      %s297 = sphi 0, %s295
      %s298 = sphi 0, %s297
      %s312 = sphi 0, %s298
      %s316 = sphi 0, %s316
      %s318 = sphi 0, %s316
      %s319 = sphi 0, %s318
      %s333 = sphi 0, %s319
      %s337 = sphi 0, %s337
      %s339 = sphi 0, %s337
      %s340 = sphi 0, %s339
      %s354 = sphi 0, %s340
      %s358 = sphi 0, %s358
      %s360 = sphi 0, %s358
      %s361 = sphi 0, %s360
      %s375 = sphi 0, %s361
      %s379 = sphi 0, %s379
      %s381 = sphi 0, %s379
      %s382 = sphi 0, %s381
      %s396 = sphi 0, %s382
      %s400 = sphi 0, %s400
      %s402 = sphi 0, %s400
      %s403 = sphi 0, %s402
      %s417 = sphi 0, %s403
      %s423 = sphi 0, %s425
      %s426 = sphi 0, %s423
      %s427 = sphi 0, %s426
      %s443 = sphi 0, %s427
    $region4: #{edsr_plus_forward.1} parent=1 // loop_header_branch
      %33 = sbr.rel (%p31) target = $region8
    $region5: #{edsr_plus_forward.1} parent=1 // loop_body
      %s35 = ssub.s32 %s30, 1
      %s36 = ssub.s32 %s30, 2
      %s37 = sadd.s32 %s30, 1
      %s38 = ssub.s32 %s30, %s37
      %p39 = scmp.eq.s32.totalorder %s38, 0
      %s41 = sadd.s32 %s40, 1
      %s42 = scalar_select %p39, %s40, %s41
      %p45 = pneg %p39
      %p46 = scmp.eq.s32.totalorder %s30, 1
      %p47 = por %p45, %p46
      %p48 = scmp.ne.s32.totalorder %s40, %s43
      %p49 = scmp.eq.s32.totalorder %s30, 0
      %p50 = por %p48, %p49
      %p51 = scmp.ne.s32.totalorder %s40, %s43
      %p52 = scmp.eq.s32.totalorder %s35, 1
      %p53 = por %p51, %p52
      %p54 = scmp.ne.s32.totalorder %s43, %s44
      %p55 = scmp.eq.s32.totalorder %s35, 0
      %p56 = por %p54, %p55
      %p57 = scmp.ne.s32.totalorder %s43, %s44
      %p58 = scmp.eq.s32.totalorder %s36, 1
      %p59 = por %p57, %p58
      %p61 = scmp.ne.s32.totalorder %s44, %s60
      %p62 = scmp.eq.s32.totalorder %s36, 0
      %p63 = por %p61, %p62
      %s65 = sadd.s32 %s64, 1
      %p68 = scmp.eq.s32.totalorder %s30, 1
      %p69 = scmp.ne.s32.totalorder %s64, %s66
      %p70 = scmp.eq.s32.totalorder %s30, 0
      %p71 = por %p69, %p70
      %p72 = scmp.ne.s32.totalorder %s64, %s66
      %p73 = scmp.eq.s32.totalorder %s35, 1
      %p74 = por %p72, %p73
      %p75 = scmp.ne.s32.totalorder %s66, %s67
      %p76 = scmp.eq.s32.totalorder %s35, 0
      %p77 = por %p75, %p76
      %p78 = scmp.ne.s32.totalorder %s66, %s67
      %p79 = scmp.eq.s32.totalorder %s36, 1
      %p80 = por %p78, %p79
      %p82 = scmp.ne.s32.totalorder %s67, %s81
      %p83 = scmp.eq.s32.totalorder %s36, 0
      %p84 = por %p82, %p83
      %s86 = sadd.s32 %s85, 1
      %p89 = scmp.eq.s32.totalorder %s30, 1
      %p90 = scmp.ne.s32.totalorder %s85, %s87
      %p91 = scmp.eq.s32.totalorder %s30, 0
      %p92 = por %p90, %p91
      %p93 = scmp.ne.s32.totalorder %s85, %s87
      %p94 = scmp.eq.s32.totalorder %s35, 1
      %p95 = por %p93, %p94
      %p96 = scmp.ne.s32.totalorder %s87, %s88
      %p97 = scmp.eq.s32.totalorder %s35, 0
      %p98 = por %p96, %p97
      %p99 = scmp.ne.s32.totalorder %s87, %s88
      %p100 = scmp.eq.s32.totalorder %s36, 1
      %p101 = por %p99, %p100
      %p103 = scmp.ne.s32.totalorder %s88, %s102
      %p104 = scmp.eq.s32.totalorder %s36, 0
      %p105 = por %p103, %p104
      %s107 = sadd.s32 %s106, 1
      %p110 = scmp.eq.s32.totalorder %s30, 1
      %p111 = scmp.ne.s32.totalorder %s106, %s108
      %p112 = scmp.eq.s32.totalorder %s30, 0
      %p113 = por %p111, %p112
      %p114 = scmp.ne.s32.totalorder %s106, %s108
      %p115 = scmp.eq.s32.totalorder %s35, 1
      %p116 = por %p114, %p115
      %p117 = scmp.ne.s32.totalorder %s108, %s109
      %p118 = scmp.eq.s32.totalorder %s35, 0
      %p119 = por %p117, %p118
      %p120 = scmp.ne.s32.totalorder %s108, %s109
      %p121 = scmp.eq.s32.totalorder %s36, 1
      %p122 = por %p120, %p121
      %p124 = scmp.ne.s32.totalorder %s109, %s123
      %p125 = scmp.eq.s32.totalorder %s36, 0
      %p126 = por %p124, %p125
      %s128 = sadd.s32 %s127, 1
      %p131 = scmp.eq.s32.totalorder %s30, 1
      %p132 = scmp.ne.s32.totalorder %s127, %s129
      %p133 = scmp.eq.s32.totalorder %s30, 0
      %p134 = por %p132, %p133
      %p135 = scmp.ne.s32.totalorder %s127, %s129
      %p136 = scmp.eq.s32.totalorder %s35, 1
      %p137 = por %p135, %p136
      %p138 = scmp.ne.s32.totalorder %s129, %s130
      %p139 = scmp.eq.s32.totalorder %s35, 0
      %p140 = por %p138, %p139
      %p141 = scmp.ne.s32.totalorder %s129, %s130
      %p142 = scmp.eq.s32.totalorder %s36, 1
      %p143 = por %p141, %p142
      %p145 = scmp.ne.s32.totalorder %s130, %s144
      %p146 = scmp.eq.s32.totalorder %s36, 0
      %p147 = por %p145, %p146
      %s149 = sadd.s32 %s148, 1
      %p152 = scmp.eq.s32.totalorder %s30, 1
      %p153 = scmp.ne.s32.totalorder %s148, %s150
      %p154 = scmp.eq.s32.totalorder %s30, 0
      %p155 = por %p153, %p154
      %p156 = scmp.ne.s32.totalorder %s148, %s150
      %p157 = scmp.eq.s32.totalorder %s35, 1
      %p158 = por %p156, %p157
      %p159 = scmp.ne.s32.totalorder %s150, %s151
      %p160 = scmp.eq.s32.totalorder %s35, 0
      %p161 = por %p159, %p160
      %p162 = scmp.ne.s32.totalorder %s150, %s151
      %p163 = scmp.eq.s32.totalorder %s36, 1
      %p164 = por %p162, %p163
      %p166 = scmp.ne.s32.totalorder %s151, %s165
      %p167 = scmp.eq.s32.totalorder %s36, 0
      %p168 = por %p166, %p167
      %s170 = sadd.s32 %s169, 1
      %p173 = scmp.eq.s32.totalorder %s30, 1
      %p174 = scmp.ne.s32.totalorder %s169, %s171
      %p175 = scmp.eq.s32.totalorder %s30, 0
      %p176 = por %p174, %p175
      %p177 = scmp.ne.s32.totalorder %s169, %s171
      %p178 = scmp.eq.s32.totalorder %s35, 1
      %p179 = por %p177, %p178
      %p180 = scmp.ne.s32.totalorder %s171, %s172
      %p181 = scmp.eq.s32.totalorder %s35, 0
      %p182 = por %p180, %p181
      %p183 = scmp.ne.s32.totalorder %s171, %s172
      %p184 = scmp.eq.s32.totalorder %s36, 1
      %p185 = por %p183, %p184
      %p187 = scmp.ne.s32.totalorder %s172, %s186
      %p188 = scmp.eq.s32.totalorder %s36, 0
      %p189 = por %p187, %p188
      %s191 = sadd.s32 %s190, 1
      %p194 = scmp.eq.s32.totalorder %s30, 1
      %p195 = scmp.ne.s32.totalorder %s190, %s192
      %p196 = scmp.eq.s32.totalorder %s30, 0
      %p197 = por %p195, %p196
      %p198 = scmp.ne.s32.totalorder %s190, %s192
      %p199 = scmp.eq.s32.totalorder %s35, 1
      %p200 = por %p198, %p199
      %p201 = scmp.ne.s32.totalorder %s192, %s193
      %p202 = scmp.eq.s32.totalorder %s35, 0
      %p203 = por %p201, %p202
      %p204 = scmp.ne.s32.totalorder %s192, %s193
      %p205 = scmp.eq.s32.totalorder %s36, 1
      %p206 = por %p204, %p205
      %p208 = scmp.ne.s32.totalorder %s193, %s207
      %p209 = scmp.eq.s32.totalorder %s36, 0
      %p210 = por %p208, %p209
      %s212 = sadd.s32 %s211, 1
      %p215 = scmp.eq.s32.totalorder %s30, 1
      %p216 = scmp.ne.s32.totalorder %s211, %s213
      %p217 = scmp.eq.s32.totalorder %s30, 0
      %p218 = por %p216, %p217
      %p219 = scmp.ne.s32.totalorder %s211, %s213
      %p220 = scmp.eq.s32.totalorder %s35, 1
      %p221 = por %p219, %p220
      %p222 = scmp.ne.s32.totalorder %s213, %s214
      %p223 = scmp.eq.s32.totalorder %s35, 0
      %p224 = por %p222, %p223
      %p225 = scmp.ne.s32.totalorder %s213, %s214
      %p226 = scmp.eq.s32.totalorder %s36, 1
      %p227 = por %p225, %p226
      %p229 = scmp.ne.s32.totalorder %s214, %s228
      %p230 = scmp.eq.s32.totalorder %s36, 0
      %p231 = por %p229, %p230
      %s233 = sadd.s32 %s232, 1
      %p236 = scmp.eq.s32.totalorder %s30, 1
      %p237 = scmp.ne.s32.totalorder %s232, %s234
      %p238 = scmp.eq.s32.totalorder %s30, 0
      %p239 = por %p237, %p238
      %p240 = scmp.ne.s32.totalorder %s232, %s234
      %p241 = scmp.eq.s32.totalorder %s35, 1
      %p242 = por %p240, %p241
      %p243 = scmp.ne.s32.totalorder %s234, %s235
      %p244 = scmp.eq.s32.totalorder %s35, 0
      %p245 = por %p243, %p244
      %p246 = scmp.ne.s32.totalorder %s234, %s235
      %p247 = scmp.eq.s32.totalorder %s36, 1
      %p248 = por %p246, %p247
      %p250 = scmp.ne.s32.totalorder %s235, %s249
      %p251 = scmp.eq.s32.totalorder %s36, 0
      %p252 = por %p250, %p251
      %s254 = sadd.s32 %s253, 1
      %p257 = scmp.eq.s32.totalorder %s30, 1
      %p258 = scmp.ne.s32.totalorder %s253, %s255
      %p259 = scmp.eq.s32.totalorder %s30, 0
      %p260 = por %p258, %p259
      %p261 = scmp.ne.s32.totalorder %s253, %s255
      %p262 = scmp.eq.s32.totalorder %s35, 1
      %p263 = por %p261, %p262
      %p264 = scmp.ne.s32.totalorder %s255, %s256
      %p265 = scmp.eq.s32.totalorder %s35, 0
      %p266 = por %p264, %p265
      %p267 = scmp.ne.s32.totalorder %s255, %s256
      %p268 = scmp.eq.s32.totalorder %s36, 1
      %p269 = por %p267, %p268
      %p271 = scmp.ne.s32.totalorder %s256, %s270
      %p272 = scmp.eq.s32.totalorder %s36, 0
      %p273 = por %p271, %p272
      %s275 = sadd.s32 %s274, 1
      %p278 = scmp.eq.s32.totalorder %s30, 1
      %p279 = scmp.ne.s32.totalorder %s274, %s276
      %p280 = scmp.eq.s32.totalorder %s30, 0
      %p281 = por %p279, %p280
      %p282 = scmp.ne.s32.totalorder %s274, %s276
      %p283 = scmp.eq.s32.totalorder %s35, 1
      %p284 = por %p282, %p283
      %p285 = scmp.ne.s32.totalorder %s276, %s277
      %p286 = scmp.eq.s32.totalorder %s35, 0
      %p287 = por %p285, %p286
      %p288 = scmp.ne.s32.totalorder %s276, %s277
      %p289 = scmp.eq.s32.totalorder %s36, 1
      %p290 = por %p288, %p289
      %p292 = scmp.ne.s32.totalorder %s277, %s291
      %p293 = scmp.eq.s32.totalorder %s36, 0
      %p294 = por %p292, %p293
      %s296 = sadd.s32 %s295, 1
      %p299 = scmp.eq.s32.totalorder %s30, 1
      %p300 = scmp.ne.s32.totalorder %s295, %s297
      %p301 = scmp.eq.s32.totalorder %s30, 0
      %p302 = por %p300, %p301
      %p303 = scmp.ne.s32.totalorder %s295, %s297
      %p304 = scmp.eq.s32.totalorder %s35, 1
      %p305 = por %p303, %p304
      %p306 = scmp.ne.s32.totalorder %s297, %s298
      %p307 = scmp.eq.s32.totalorder %s35, 0
      %p308 = por %p306, %p307
      %p309 = scmp.ne.s32.totalorder %s297, %s298
      %p310 = scmp.eq.s32.totalorder %s36, 1
      %p311 = por %p309, %p310
      %p313 = scmp.ne.s32.totalorder %s298, %s312
      %p314 = scmp.eq.s32.totalorder %s36, 0
      %p315 = por %p313, %p314
      %s317 = sadd.s32 %s316, 1
      %p320 = scmp.eq.s32.totalorder %s30, 1
      %p321 = scmp.ne.s32.totalorder %s316, %s318
      %p322 = scmp.eq.s32.totalorder %s30, 0
      %p323 = por %p321, %p322
      %p324 = scmp.ne.s32.totalorder %s316, %s318
      %p325 = scmp.eq.s32.totalorder %s35, 1
      %p326 = por %p324, %p325
      %p327 = scmp.ne.s32.totalorder %s318, %s319
      %p328 = scmp.eq.s32.totalorder %s35, 0
      %p329 = por %p327, %p328
      %p330 = scmp.ne.s32.totalorder %s318, %s319
      %p331 = scmp.eq.s32.totalorder %s36, 1
      %p332 = por %p330, %p331
      %p334 = scmp.ne.s32.totalorder %s319, %s333
      %p335 = scmp.eq.s32.totalorder %s36, 0
      %p336 = por %p334, %p335
      %s338 = sadd.s32 %s337, 1
      %p341 = scmp.eq.s32.totalorder %s30, 1
      %p342 = scmp.ne.s32.totalorder %s337, %s339
      %p343 = scmp.eq.s32.totalorder %s30, 0
      %p344 = por %p342, %p343
      %p345 = scmp.ne.s32.totalorder %s337, %s339
      %p346 = scmp.eq.s32.totalorder %s35, 1
      %p347 = por %p345, %p346
      %p348 = scmp.ne.s32.totalorder %s339, %s340
      %p349 = scmp.eq.s32.totalorder %s35, 0
      %p350 = por %p348, %p349
      %p351 = scmp.ne.s32.totalorder %s339, %s340
      %p352 = scmp.eq.s32.totalorder %s36, 1
      %p353 = por %p351, %p352
      %p355 = scmp.ne.s32.totalorder %s340, %s354
      %p356 = scmp.eq.s32.totalorder %s36, 0
      %p357 = por %p355, %p356
      %s359 = sadd.s32 %s358, 1
      %p362 = scmp.eq.s32.totalorder %s30, 1
      %p363 = scmp.ne.s32.totalorder %s358, %s360
      %p364 = scmp.eq.s32.totalorder %s30, 0
      %p365 = por %p363, %p364
      %p366 = scmp.ne.s32.totalorder %s358, %s360
      %p367 = scmp.eq.s32.totalorder %s35, 1
      %p368 = por %p366, %p367
      %p369 = scmp.ne.s32.totalorder %s360, %s361
      %p370 = scmp.eq.s32.totalorder %s35, 0
      %p371 = por %p369, %p370
      %p372 = scmp.ne.s32.totalorder %s360, %s361
      %p373 = scmp.eq.s32.totalorder %s36, 1
      %p374 = por %p372, %p373
      %p376 = scmp.ne.s32.totalorder %s361, %s375
      %p377 = scmp.eq.s32.totalorder %s36, 0
      %p378 = por %p376, %p377
      %s380 = sadd.s32 %s379, 1
      %p383 = scmp.eq.s32.totalorder %s30, 1
      %p384 = scmp.ne.s32.totalorder %s379, %s381
      %p385 = scmp.eq.s32.totalorder %s30, 0
      %p386 = por %p384, %p385
      %p387 = scmp.ne.s32.totalorder %s379, %s381
      %p388 = scmp.eq.s32.totalorder %s35, 1
      %p389 = por %p387, %p388
      %p390 = scmp.ne.s32.totalorder %s381, %s382
      %p391 = scmp.eq.s32.totalorder %s35, 0
      %p392 = por %p390, %p391
      %p393 = scmp.ne.s32.totalorder %s381, %s382
      %p394 = scmp.eq.s32.totalorder %s36, 1
      %p395 = por %p393, %p394
      %p397 = scmp.ne.s32.totalorder %s382, %s396
      %p398 = scmp.eq.s32.totalorder %s36, 0
      %p399 = por %p397, %p398
      %s401 = sadd.s32 %s400, 1
      %p404 = scmp.eq.s32.totalorder %s30, 1
      %p405 = scmp.ne.s32.totalorder %s400, %s402
      %p406 = scmp.eq.s32.totalorder %s30, 0
      %p407 = por %p405, %p406
      %p408 = scmp.ne.s32.totalorder %s400, %s402
      %p409 = scmp.eq.s32.totalorder %s35, 1
      %p410 = por %p408, %p409
      %p411 = scmp.ne.s32.totalorder %s402, %s403
      %p412 = scmp.eq.s32.totalorder %s35, 0
      %p413 = por %p411, %p412
      %p414 = scmp.ne.s32.totalorder %s402, %s403
      %p415 = scmp.eq.s32.totalorder %s36, 1
      %p416 = por %p414, %p415
      %p418 = scmp.ne.s32.totalorder %s403, %s417
      %p419 = scmp.eq.s32.totalorder %s36, 0
      %p420 = por %p418, %p419
      %s421 = ssub.s32 %s30, %s37
      %p422 = scmp.eq.s32.totalorder %s421, 0
      %s424 = sadd.s32 %s423, 1
      %s425 = scalar_select %p422, %s423, %s424
      %p428 = pneg %p422
      %p429 = scmp.eq.s32.totalorder %s30, 1
      %p430 = por %p428, %p429
      %p431 = scmp.ne.s32.totalorder %s423, %s426
      %p432 = scmp.eq.s32.totalorder %s30, 0
      %p433 = por %p431, %p432
      %p434 = scmp.ne.s32.totalorder %s423, %s426
      %p435 = scmp.eq.s32.totalorder %s35, 1
      %p436 = por %p434, %p435
      %p437 = scmp.ne.s32.totalorder %s426, %s427
      %p438 = scmp.eq.s32.totalorder %s35, 0
      %p439 = por %p437, %p438
      %p440 = scmp.ne.s32.totalorder %s426, %s427
      %p441 = scmp.eq.s32.totalorder %s36, 1
      %p442 = por %p440, %p441
      %p444 = scmp.ne.s32.totalorder %s427, %s443
      %p445 = scmp.eq.s32.totalorder %s36, 0
      %p446 = por %p444, %p445
      %p447 = scmp.le.s32.totalorder 1, %s30
      %p448 = scmp.lt.s32.totalorder %s30, 3
      %p449 = pnand %p447, %p448
      %p450 = pneg %p449
      // Predicated region
      $region9: #{edsr_plus_forward.1} parent=5 // pred_check
        _
      $region10: #{edsr_plus_forward.1} parent=5 // pred_check_branch
        %452 = sbr.rel (%p449) target = $region12
      $region11: #{edsr_plus_forward.1} parent=5 // pred_region
        %s453 = ssub.s32 %s30, 1
        // Predicated region
        $region13: #{edsr_plus_forward.1} parent=11 // pred_check
          %p454 = pneg %p77
        $region14: #{edsr_plus_forward.1} parent=11 // pred_check_branch
          %456 = sbr.rel (%p454) target = $region16
        $region15: #{edsr_plus_forward.1} parent=11 // pred_region
          %s458 = ssub.s32 128, 128
          %459 = vsyncadd [#allocation3], %s458
          %s461 = sshll.u32 [#allocation2], 4
          %s462 = int_to_ptr.vmem [resolvable:$true] %s461
          %464 = dma.hbm_to_vmem [thread:$0]  %s1, 128, %s462, [#allocation3]
        $region16: #{edsr_plus_forward.1} parent=11 // pred_fallthru
          _
        // Predicated region
        $region17: #{edsr_plus_forward.1} parent=11 // pred_check
          %p465 = pneg %p98
        $region18: #{edsr_plus_forward.1} parent=11 // pred_check_branch
          %467 = sbr.rel (%p465) target = $region20
        $region19: #{edsr_plus_forward.1} parent=11 // pred_region
          %s469 = ssub.s32 2304, 2304
          %470 = vsyncadd [#allocation5], %s469
          %s471 = sshll.u32 [#allocation4], 4
          %s472 = int_to_ptr.vmem [resolvable:$true] %s471
          %477 = dma.hbm_to_vmem [thread:$0]  %s2, 2304, %s472, [#allocation5], 256, 256, 16
        $region20: #{edsr_plus_forward.1} parent=11 // pred_fallthru
          _
        // Predicated region
        $region21: #{edsr_plus_forward.1} parent=11 // pred_check
          %p478 = pneg %p119
        $region22: #{edsr_plus_forward.1} parent=11 // pred_check_branch
          %480 = sbr.rel (%p478) target = $region24
        $region23: #{edsr_plus_forward.1} parent=11 // pred_region
          %s482 = ssub.s32 9216, 9216
          %483 = vsyncadd [#allocation5], %s482
          %s484 = sshll.u32 [#allocation6], 4
          %s485 = int_to_ptr.vmem [resolvable:$true] %s484
          %490 = dma.hbm_to_vmem [thread:$0]  %s3, 9216, %s485, [#allocation5], 256, 256, 16
        $region24: #{edsr_plus_forward.1} parent=11 // pred_fallthru
          _
        // Predicated region
        $region25: #{edsr_plus_forward.1} parent=11 // pred_check
          %p491 = pneg %p140
        $region26: #{edsr_plus_forward.1} parent=11 // pred_check_branch
          %493 = sbr.rel (%p491) target = $region28
        $region27: #{edsr_plus_forward.1} parent=11 // pred_region
          %s495 = ssub.s32 64, 64
          %496 = vsyncadd [#allocation8], %s495
          %s498 = sshll.u32 [#allocation7], 4
          %s499 = int_to_ptr.vmem [resolvable:$true] %s498
          %501 = dma.hbm_to_vmem [thread:$0]  %s4, 64, %s499, [#allocation8]
        $region28: #{edsr_plus_forward.1} parent=11 // pred_fallthru
          _
        // Predicated region
        $region29: #{edsr_plus_forward.1} parent=11 // pred_check
          %p502 = pneg %p161
        $region30: #{edsr_plus_forward.1} parent=11 // pred_check_branch
          %504 = sbr.rel (%p502) target = $region32
        $region31: #{edsr_plus_forward.1} parent=11 // pred_region
          _
        $region32: #{edsr_plus_forward.1} parent=11 // pred_fallthru
          _
        // Predicated region
        $region33: #{edsr_plus_forward.1} parent=11 // pred_check
          %p505 = pneg %p182
        $region34: #{edsr_plus_forward.1} parent=11 // pred_check_branch
          %507 = sbr.rel (%p505) target = $region36
        $region35: #{edsr_plus_forward.1} parent=11 // pred_region
          %s509 = ssub.s32 64, 64
          %510 = vsyncadd [#allocation8], %s509
          %s512 = sshll.u32 [#allocation9], 4
          %s513 = int_to_ptr.vmem [resolvable:$true] %s512
          %515 = dma.hbm_to_vmem [thread:$0]  %s6, 64, %s513, [#allocation8]
        $region36: #{edsr_plus_forward.1} parent=11 // pred_fallthru
          _
        // Predicated region
        $region37: #{edsr_plus_forward.1} parent=11 // pred_check
          %p516 = pneg %p203
        $region38: #{edsr_plus_forward.1} parent=11 // pred_check_branch
          %518 = sbr.rel (%p516) target = $region40
        $region39: #{edsr_plus_forward.1} parent=11 // pred_region
          _
        $region40: #{edsr_plus_forward.1} parent=11 // pred_fallthru
          _
        // Predicated region
        $region41: #{edsr_plus_forward.1} parent=11 // pred_check
          %p519 = pneg %p224
        $region42: #{edsr_plus_forward.1} parent=11 // pred_check_branch
          %521 = sbr.rel (%p519) target = $region44
        $region43: #{edsr_plus_forward.1} parent=11 // pred_region
          %s523 = ssub.s32 64, 64
          %524 = vsyncadd [#allocation11], %s523
          %s526 = sshll.u32 [#allocation10], 4
          %s527 = int_to_ptr.vmem [resolvable:$true] %s526
          %529 = dma.hbm_to_vmem [thread:$0]  %s8, 64, %s527, [#allocation11]
        $region44: #{edsr_plus_forward.1} parent=11 // pred_fallthru
          _
        // Predicated region
        $region45: #{edsr_plus_forward.1} parent=11 // pred_check
          %p530 = pneg %p245
        $region46: #{edsr_plus_forward.1} parent=11 // pred_check_branch
          %532 = sbr.rel (%p530) target = $region48
        $region47: #{edsr_plus_forward.1} parent=11 // pred_region
          _
        $region48: #{edsr_plus_forward.1} parent=11 // pred_fallthru
          _
        // Predicated region
        $region49: #{edsr_plus_forward.1} parent=11 // pred_check
          %p533 = pneg %p266
        $region50: #{edsr_plus_forward.1} parent=11 // pred_check_branch
          %535 = sbr.rel (%p533) target = $region52
        $region51: #{edsr_plus_forward.1} parent=11 // pred_region
          %s537 = ssub.s32 64, 64
          %538 = vsyncadd [#allocation11], %s537
          %s540 = sshll.u32 [#allocation12], 4
          %s541 = int_to_ptr.vmem [resolvable:$true] %s540
          %543 = dma.hbm_to_vmem [thread:$0]  %s10, 64, %s541, [#allocation11]
        $region52: #{edsr_plus_forward.1} parent=11 // pred_fallthru
          _
        // Predicated region
        $region53: #{edsr_plus_forward.1} parent=11 // pred_check
          %p544 = pneg %p287
        $region54: #{edsr_plus_forward.1} parent=11 // pred_check_branch
          %546 = sbr.rel (%p544) target = $region56
        $region55: #{edsr_plus_forward.1} parent=11 // pred_region
          _
        $region56: #{edsr_plus_forward.1} parent=11 // pred_fallthru
          _
        // Predicated region
        $region57: #{edsr_plus_forward.1} parent=11 // pred_check
          %p547 = pneg %p308
        $region58: #{edsr_plus_forward.1} parent=11 // pred_check_branch
          %549 = sbr.rel (%p547) target = $region60
        $region59: #{edsr_plus_forward.1} parent=11 // pred_region
          %s551 = ssub.s32 64, 64
          %552 = vsyncadd [#allocation14], %s551
          %s554 = sshll.u32 [#allocation13], 4
          %s555 = int_to_ptr.vmem [resolvable:$true] %s554
          %557 = dma.hbm_to_vmem [thread:$0]  %s12, 64, %s555, [#allocation14]
        $region60: #{edsr_plus_forward.1} parent=11 // pred_fallthru
          _
        // Predicated region
        $region61: #{edsr_plus_forward.1} parent=11 // pred_check
          %p558 = pneg %p329
        $region62: #{edsr_plus_forward.1} parent=11 // pred_check_branch
          %560 = sbr.rel (%p558) target = $region64
        $region63: #{edsr_plus_forward.1} parent=11 // pred_region
          _
        $region64: #{edsr_plus_forward.1} parent=11 // pred_fallthru
          _
        // Predicated region
        $region65: #{edsr_plus_forward.1} parent=11 // pred_check
          %p561 = pneg %p350
        $region66: #{edsr_plus_forward.1} parent=11 // pred_check_branch
          %563 = sbr.rel (%p561) target = $region68
        $region67: #{edsr_plus_forward.1} parent=11 // pred_region
          %s565 = ssub.s32 256, 256
          %566 = vsyncadd [#allocation14], %s565
          %s567 = sshll.u32 [#allocation15], 4
          %s568 = int_to_ptr.vmem [resolvable:$true] %s567
          %573 = dma.hbm_to_vmem [thread:$0]  %s14, 256, %s568, [#allocation14], 64, 64, 4
        $region68: #{edsr_plus_forward.1} parent=11 // pred_fallthru
          _
        // Predicated region
        $region69: #{edsr_plus_forward.1} parent=11 // pred_check
          %p574 = pneg %p371
        $region70: #{edsr_plus_forward.1} parent=11 // pred_check_branch
          %576 = sbr.rel (%p574) target = $region72
        $region71: #{edsr_plus_forward.1} parent=11 // pred_region
          _
        $region72: #{edsr_plus_forward.1} parent=11 // pred_fallthru
          _
        // Predicated region
        $region73: #{edsr_plus_forward.1} parent=11 // pred_check
          %p577 = pneg %p392
        $region74: #{edsr_plus_forward.1} parent=11 // pred_check_branch
          %579 = sbr.rel (%p577) target = $region76
        $region75: #{edsr_plus_forward.1} parent=11 // pred_region
          %s581 = ssub.s32 384, 384
          %582 = vsyncadd [#allocation17], %s581
          %s583 = sshll.u32 [#allocation16], 4
          %s584 = int_to_ptr.vmem [resolvable:$true] %s583
          %589 = dma.hbm_to_vmem [thread:$0]  %s16, 384, %s584, [#allocation17], 192, 192, 12
        $region76: #{edsr_plus_forward.1} parent=11 // pred_fallthru
          _
        // Predicated region
        $region77: #{edsr_plus_forward.1} parent=11 // pred_check
          %p590 = pneg %p413
        $region78: #{edsr_plus_forward.1} parent=11 // pred_check_branch
          %592 = sbr.rel (%p590) target = $region80
        $region79: #{edsr_plus_forward.1} parent=11 // pred_region
          _
        $region80: #{edsr_plus_forward.1} parent=11 // pred_fallthru
          _
      $region12: #{edsr_plus_forward.1} parent=5 // pred_fallthru
        _
      %p593 = scmp.lt.s32.totalorder %s30, 2
      // Predicated region
      $region81: #{edsr_plus_forward.1} parent=5 // pred_check
        %p594 = pneg %p593
      $region82: #{edsr_plus_forward.1} parent=5 // pred_check_branch
        %596 = sbr.rel (%p594) target = $region84
      $region83: #{edsr_plus_forward.1} parent=5 // pred_region
        // Predicated region
        $region85: #{edsr_plus_forward.1} parent=83 // pred_check
          %p597 = pneg %p50
        $region86: #{edsr_plus_forward.1} parent=83 // pred_check_branch
          %599 = sbr.rel (%p597) target = $region88
        $region87: #{edsr_plus_forward.1} parent=83 // pred_region
          %p600 = scmp.lt.s32.totalorder %s30, 1
          %s601 = scalar_select %p600, %s30, 1
          %s602 = smul.addr %s601, 2
          %s603 = smul.addr %s602, 8
          %s604 = scalar_lea.vmem %s0, %s603
        $region88: #{edsr_plus_forward.1} parent=83 // pred_fallthru
          _
      $region84: #{edsr_plus_forward.1} parent=5 // pred_fallthru
        _
      %p605 = scmp.le.s32.totalorder 1, %s30
      %p606 = scmp.lt.s32.totalorder %s30, 3
      %p607 = pnand %p605, %p606
      %p608 = pneg %p607
      // Predicated region
      $region89: #{edsr_plus_forward.1} parent=5 // pred_check
        _
      $region90: #{edsr_plus_forward.1} parent=5 // pred_check_branch
        %610 = sbr.rel (%p607) target = $region92
      $region91: #{edsr_plus_forward.1} parent=5 // pred_region
        %s611 = ssub.s32 %s30, 1
        // Predicated region
        $region93: #{edsr_plus_forward.1} parent=91 // pred_check
          %p612 = pneg %p77
        $region94: #{edsr_plus_forward.1} parent=91 // pred_check_branch
          %614 = sbr.rel (%p612) target = $region96
        $region95: #{edsr_plus_forward.1} parent=91 // pred_region
          %615 = dma.done [#allocation3], 128
        $region96: #{edsr_plus_forward.1} parent=91 // pred_fallthru
          _
        // Predicated region
        $region97: #{edsr_plus_forward.1} parent=91 // pred_check
          %p616 = pneg %p98
        $region98: #{edsr_plus_forward.1} parent=91 // pred_check_branch
          %618 = sbr.rel (%p616) target = $region100
        $region99: #{edsr_plus_forward.1} parent=91 // pred_region
          %619 = dma.done [#allocation5], 2304
        $region100: #{edsr_plus_forward.1} parent=91 // pred_fallthru
          _
        // Predicated region
        $region101: #{edsr_plus_forward.1} parent=91 // pred_check
          %p620 = pneg %p119
        $region102: #{edsr_plus_forward.1} parent=91 // pred_check_branch
          %622 = sbr.rel (%p620) target = $region104
        $region103: #{edsr_plus_forward.1} parent=91 // pred_region
          %623 = dma.done [#allocation5], 9216
        $region104: #{edsr_plus_forward.1} parent=91 // pred_fallthru
          _
        // Predicated region
        $region105: #{edsr_plus_forward.1} parent=91 // pred_check
          %p624 = pneg %p140
        $region106: #{edsr_plus_forward.1} parent=91 // pred_check_branch
          %626 = sbr.rel (%p624) target = $region108
        $region107: #{edsr_plus_forward.1} parent=91 // pred_region
          %627 = dma.done [#allocation8], 64
        $region108: #{edsr_plus_forward.1} parent=91 // pred_fallthru
          _
        // Predicated region
        $region109: #{edsr_plus_forward.1} parent=91 // pred_check
          %p628 = pneg %p182
        $region110: #{edsr_plus_forward.1} parent=91 // pred_check_branch
          %630 = sbr.rel (%p628) target = $region112
        $region111: #{edsr_plus_forward.1} parent=91 // pred_region
          %631 = dma.done [#allocation8], 64
        $region112: #{edsr_plus_forward.1} parent=91 // pred_fallthru
          _
        // Predicated region
        $region113: #{edsr_plus_forward.1} parent=91 // pred_check
          %p632 = pneg %p224
        $region114: #{edsr_plus_forward.1} parent=91 // pred_check_branch
          %634 = sbr.rel (%p632) target = $region116
        $region115: #{edsr_plus_forward.1} parent=91 // pred_region
          %635 = dma.done [#allocation11], 64
        $region116: #{edsr_plus_forward.1} parent=91 // pred_fallthru
          _
        // Predicated region
        $region117: #{edsr_plus_forward.1} parent=91 // pred_check
          %p636 = pneg %p266
        $region118: #{edsr_plus_forward.1} parent=91 // pred_check_branch
          %638 = sbr.rel (%p636) target = $region120
        $region119: #{edsr_plus_forward.1} parent=91 // pred_region
          %639 = dma.done [#allocation11], 64
        $region120: #{edsr_plus_forward.1} parent=91 // pred_fallthru
          _
        // Predicated region
        $region121: #{edsr_plus_forward.1} parent=91 // pred_check
          %p640 = pneg %p308
        $region122: #{edsr_plus_forward.1} parent=91 // pred_check_branch
          %642 = sbr.rel (%p640) target = $region124
        $region123: #{edsr_plus_forward.1} parent=91 // pred_region
          %643 = dma.done [#allocation14], 64
        $region124: #{edsr_plus_forward.1} parent=91 // pred_fallthru
          _
        // Predicated region
        $region125: #{edsr_plus_forward.1} parent=91 // pred_check
          %p644 = pneg %p350
        $region126: #{edsr_plus_forward.1} parent=91 // pred_check_branch
          %646 = sbr.rel (%p644) target = $region128
        $region127: #{edsr_plus_forward.1} parent=91 // pred_region
          %647 = dma.done [#allocation14], 256
        $region128: #{edsr_plus_forward.1} parent=91 // pred_fallthru
          _
        // Predicated region
        $region129: #{edsr_plus_forward.1} parent=91 // pred_check
          %p648 = pneg %p392
        $region130: #{edsr_plus_forward.1} parent=91 // pred_check_branch
          %650 = sbr.rel (%p648) target = $region132
        $region131: #{edsr_plus_forward.1} parent=91 // pred_region
          %651 = dma.done [#allocation17], 384
        $region132: #{edsr_plus_forward.1} parent=91 // pred_fallthru
          _
        %p652 = scmp.lt.s32.totalorder %s35, 1
        %s653 = scalar_select %p652, %s35, 1
        %s654 = smul.addr %s653, 2
        %s655 = smul.addr %s654, 8
        %s656 = scalar_lea.vmem %s0, %s655
        %p657 = pneg %p56
        %p658 = pneg %p53
        %p659 = pneg %p77
        %p660 = pneg %p74
        %p661 = pneg %p98
        %p662 = pneg %p95
        %p663 = pneg %p119
        %p664 = pneg %p116
        %p665 = pneg %p140
        %p666 = pneg %p137
        %p667 = pneg %p161
        %p668 = pneg %p158
        %p669 = pneg %p182
        %p670 = pneg %p179
        %p671 = pneg %p203
        %p672 = pneg %p200
        %p673 = pneg %p224
        %p674 = pneg %p221
        %p675 = pneg %p245
        %p676 = pneg %p242
        %p677 = pneg %p266
        %p678 = pneg %p263
        %p679 = pneg %p287
        %p680 = pneg %p284
        %p681 = pneg %p308
        %p682 = pneg %p305
        %p683 = pneg %p329
        %p684 = pneg %p326
        %p685 = pneg %p350
        %p686 = pneg %p347
        %p687 = pneg %p371
        %p688 = pneg %p368
        %p689 = pneg %p392
        %p690 = pneg %p389
        %p691 = pneg %p413
        %p692 = pneg %p410
        %p693 = pneg %p439
        %p694 = pneg %p436
        %p695 = scmp.lt.s32.totalorder %s35, 1
        %s696 = scalar_select %p695, %s35, 1
        %s697 = smul.addr %s696, 4
        %s698 = smul.addr %s697, 8
        %s699 = scalar_lea.vmem %s18, %s698
        %p700 = scmp.lt.s32.totalorder %s35, 1
        %s701 = scalar_select %p700, %s35, 1
        %s702 = smul.addr %s701, 2
        %s703 = smul.addr %s702, 8
        %s704 = scalar_lea.vmem %s0, %s703
        %p705 = scmp.lt.s32.totalorder %s35, 1
        %s706 = scalar_select %p705, %s35, 1
        %s707 = smul.addr %s706, 4
        %s708 = smul.addr %s707, 8
        %s709 = scalar_lea.vmem %s18, %s708
        %v711 = vld [vmem:[#allocation4] sm:$0xff]
        %v712 = vld [vmem:[#allocation4 + $0x8] sm:$0xff]
        %v713 = vld [vmem:[#allocation4 + $0x10] sm:$0xff]
        %v714 = vld [vmem:[#allocation4 + $0x18] sm:$0xff]
        %v715 = vld [vmem:[#allocation4 + $0x20] sm:$0xff]
        %v716 = vld [vmem:[#allocation4 + $0x28] sm:$0xff]
        %v717 = vld [vmem:[#allocation4 + $0x30] sm:$0xff]
        %v718 = vld [vmem:[#allocation4 + $0x38] sm:$0xff]
        %v719 = vld [vmem:[#allocation4 + $0x40] sm:$0xff]
        %v720 = vld [vmem:[#allocation4 + $0x48] sm:$0xff]
        %v721 = vld [vmem:[#allocation4 + $0x50] sm:$0xff]
        %v722 = vld [vmem:[#allocation4 + $0x58] sm:$0xff]
        %v723 = vld [vmem:[#allocation4 + $0x60] sm:$0xff]
        %v724 = vld [vmem:[#allocation4 + $0x68] sm:$0xff]
        %v725 = vld [vmem:[#allocation4 + $0x70] sm:$0xff]
        %v726 = vld [vmem:[#allocation4 + $0x78] sm:$0xff]
        %v727 = vld [vmem:[#allocation4 + $0x80] sm:$0xff]
        %v728 = vld [vmem:[#allocation4 + $0x88] sm:$0xff]
        %v729 = vld [vmem:[#allocation6] sm:$0xff]
        %v730 = vld [vmem:[#allocation6 + $0x8] sm:$0xff]
        %v731 = vld [vmem:[#allocation6 + $0x10] sm:$0xff]
        %v732 = vld [vmem:[#allocation6 + $0x18] sm:$0xff]
        %v733 = vld [vmem:[#allocation6 + $0x20] sm:$0xff]
        %v734 = vld [vmem:[#allocation6 + $0x28] sm:$0xff]
        %v735 = vld [vmem:[#allocation6 + $0x30] sm:$0xff]
        %v736 = vld [vmem:[#allocation6 + $0x38] sm:$0xff]
        %v737 = vld [vmem:[#allocation6 + $0x40] sm:$0xff]
        %v738 = vld [vmem:[#allocation6 + $0x48] sm:$0xff]
        %v739 = vld [vmem:[#allocation6 + $0x50] sm:$0xff]
        %v740 = vld [vmem:[#allocation6 + $0x58] sm:$0xff]
        %v741 = vld [vmem:[#allocation6 + $0x60] sm:$0xff]
        %v742 = vld [vmem:[#allocation6 + $0x68] sm:$0xff]
        %v743 = vld [vmem:[#allocation6 + $0x70] sm:$0xff]
        %v744 = vld [vmem:[#allocation6 + $0x78] sm:$0xff]
        %v745 = vld [vmem:[#allocation6 + $0x80] sm:$0xff]
        %v746 = vld [vmem:[#allocation6 + $0x88] sm:$0xff]
        %v747 = vld [vmem:[#allocation6 + $0x90] sm:$0xff]
        %v748 = vld [vmem:[#allocation6 + $0x98] sm:$0xff]
        %v749 = vld [vmem:[#allocation6 + $0xa0] sm:$0xff]
        %v750 = vld [vmem:[#allocation6 + $0xa8] sm:$0xff]
        %v751 = vld [vmem:[#allocation6 + $0xb0] sm:$0xff]
        %v752 = vld [vmem:[#allocation6 + $0xb8] sm:$0xff]
        %v753 = vld [vmem:[#allocation6 + $0xc0] sm:$0xff]
        %v754 = vld [vmem:[#allocation6 + $0xc8] sm:$0xff]
        %v755 = vld [vmem:[#allocation6 + $0xd0] sm:$0xff]
        %v756 = vld [vmem:[#allocation6 + $0xd8] sm:$0xff]
        %v757 = vld [vmem:[#allocation6 + $0xe0] sm:$0xff]
        %v758 = vld [vmem:[#allocation6 + $0xe8] sm:$0xff]
        %v759 = vld [vmem:[#allocation6 + $0xf0] sm:$0xff]
        %v760 = vld [vmem:[#allocation6 + $0xf8] sm:$0xff]
        %v761 = vld [vmem:[#allocation6 + $0x100] sm:$0xff]
        %v762 = vld [vmem:[#allocation6 + $0x108] sm:$0xff]
        %v763 = vld [vmem:[#allocation6 + $0x110] sm:$0xff]
        %v764 = vld [vmem:[#allocation6 + $0x118] sm:$0xff]
        %v765 = vld [vmem:[#allocation6 + $0x120] sm:$0xff]
        %v766 = vld [vmem:[#allocation6 + $0x128] sm:$0xff]
        %v767 = vld [vmem:[#allocation6 + $0x130] sm:$0xff]
        %v768 = vld [vmem:[#allocation6 + $0x138] sm:$0xff]
        %v769 = vld [vmem:[#allocation6 + $0x140] sm:$0xff]
        %v770 = vld [vmem:[#allocation6 + $0x148] sm:$0xff]
        %v771 = vld [vmem:[#allocation6 + $0x150] sm:$0xff]
        %v772 = vld [vmem:[#allocation6 + $0x158] sm:$0xff]
        %v773 = vld [vmem:[#allocation6 + $0x160] sm:$0xff]
        %v774 = vld [vmem:[#allocation6 + $0x168] sm:$0xff]
        %v775 = vld [vmem:[#allocation6 + $0x170] sm:$0xff]
        %v776 = vld [vmem:[#allocation6 + $0x178] sm:$0xff]
        %v777 = vld [vmem:[#allocation6 + $0x180] sm:$0xff]
        %v778 = vld [vmem:[#allocation6 + $0x188] sm:$0xff]
        %v779 = vld [vmem:[#allocation6 + $0x190] sm:$0xff]
        %v780 = vld [vmem:[#allocation6 + $0x198] sm:$0xff]
        %v781 = vld [vmem:[#allocation6 + $0x1a0] sm:$0xff]
        %v782 = vld [vmem:[#allocation6 + $0x1a8] sm:$0xff]
        %v783 = vld [vmem:[#allocation6 + $0x1b0] sm:$0xff]
        %v784 = vld [vmem:[#allocation6 + $0x1b8] sm:$0xff]
        %v785 = vld [vmem:[#allocation6 + $0x1c0] sm:$0xff]
        %v786 = vld [vmem:[#allocation6 + $0x1c8] sm:$0xff]
        %v787 = vld [vmem:[#allocation6 + $0x1d0] sm:$0xff]
        %v788 = vld [vmem:[#allocation6 + $0x1d8] sm:$0xff]
        %v789 = vld [vmem:[#allocation6 + $0x1e0] sm:$0xff]
        %v790 = vld [vmem:[#allocation6 + $0x1e8] sm:$0xff]
        %v791 = vld [vmem:[#allocation6 + $0x1f0] sm:$0xff]
        %v792 = vld [vmem:[#allocation6 + $0x1f8] sm:$0xff]
        %v793 = vld [vmem:[#allocation6 + $0x200] sm:$0xff]
        %v794 = vld [vmem:[#allocation6 + $0x208] sm:$0xff]
        %v795 = vld [vmem:[#allocation6 + $0x210] sm:$0xff]
        %v796 = vld [vmem:[#allocation6 + $0x218] sm:$0xff]
        %v797 = vld [vmem:[#allocation6 + $0x220] sm:$0xff]
        %v798 = vld [vmem:[#allocation6 + $0x228] sm:$0xff]
        %v799 = vld [vmem:[#allocation6 + $0x230] sm:$0xff]
        %v800 = vld [vmem:[#allocation6 + $0x238] sm:$0xff]
        %v801 = vld [vmem:[%s704] sm:$0xff]
        %v802 = vld [vmem:[%s704 + $0x8] sm:$0xff]
        %v803 = vld [vmem:[#allocation2] sm:$0xff]
        %805 = vset.pattern.permute.xlu0 0
        %806 = vperm.xlu0 %805, %v803
        %v807 = vpop.permute.xlu0 %806
        %v809 = vsub.f32 %v801, %v807
        %v810 = vsub.f32 %v802, %v807
        %811 = vrot.lane.b32.xlu0 %v809, 17
        %v812 = vpop.permute.xlu0 %811
        %813 = vrot.lane.b32.xlu0 %v810, 17
        %v814 = vpop.permute.xlu0 %813
        %v815 = vlaneseq
        %v816 = vand.u32 %v815, 127
        %vm817 = vcmp.lt.s32.totalorder %v816, 17
        %v818 = vsel %vm817, %v812, %v814
        %v819 = vsel %vm817, %v814, %v812
        %820 = vrot.lane.b32.xlu0 %v809, 16
        %v821 = vpop.permute.xlu0 %820
        %822 = vrot.lane.b32.xlu0 %v810, 16
        %v823 = vpop.permute.xlu0 %822
        %vm824 = vcmp.lt.s32.totalorder %v816, 16
        %v825 = vsel %vm824, %v821, %v823
        %v826 = vsel %vm824, %v823, %v821
        %827 = vrot.lane.b32.xlu0 %v809, 15
        %v828 = vpop.permute.xlu0 %827
        %829 = vrot.lane.b32.xlu0 %v810, 15
        %v830 = vpop.permute.xlu0 %829
        %vm831 = vcmp.lt.s32.totalorder %v816, 15
        %v832 = vsel %vm831, %v828, %v830
        %v833 = vsel %vm831, %v830, %v828
        %834 = vrot.lane.b32.xlu0 %v809, 1
        %v835 = vpop.permute.xlu0 %834
        %836 = vrot.lane.b32.xlu0 %v810, 1
        %v837 = vpop.permute.xlu0 %836
        %vm838 = vcmp.lt.s32.totalorder %v816, 1
        %v839 = vsel %vm838, %v835, %v837
        %v840 = vsel %vm838, %v837, %v835
        %841 = vrot.lane.b32.xlu0 %v809, 127
        %v842 = vpop.permute.xlu0 %841
        %843 = vrot.lane.b32.xlu0 %v810, 127
        %v844 = vpop.permute.xlu0 %843
        %vm845 = vcmp.lt.s32.totalorder %v816, 127
        %v846 = vsel %vm845, %v842, %v844
        %v847 = vsel %vm845, %v844, %v842
        %848 = vrot.lane.b32.xlu0 %v809, 113
        %v849 = vpop.permute.xlu0 %848
        %850 = vrot.lane.b32.xlu0 %v810, 113
        %v851 = vpop.permute.xlu0 %850
        %vm852 = vcmp.lt.s32.totalorder %v816, 113
        %v853 = vsel %vm852, %v849, %v851
        %v854 = vsel %vm852, %v851, %v849
        %855 = vrot.lane.b32.xlu0 %v809, 112
        %v856 = vpop.permute.xlu0 %855
        %857 = vrot.lane.b32.xlu0 %v810, 112
        %v858 = vpop.permute.xlu0 %857
        %vm859 = vcmp.lt.s32.totalorder %v816, 112
        %v860 = vsel %vm859, %v856, %v858
        %v861 = vsel %vm859, %v858, %v856
        %862 = vrot.lane.b32.xlu0 %v809, 111
        %v863 = vpop.permute.xlu0 %862
        %864 = vrot.lane.b32.xlu0 %v810, 111
        %v865 = vpop.permute.xlu0 %864
        %vm866 = vcmp.lt.s32.totalorder %v816, 111
        %v867 = vsel %vm866, %v863, %v865
        %v868 = vsel %vm866, %v865, %v863
        %v869 = vmul.f32 %v819, %v711
        %v870 = vmul.f32 %v818, %v712
        %v871 = vmul.f32 %v826, %v713
        %v872 = vmul.f32 %v825, %v714
        %v873 = vmul.f32 %v833, %v715
        %v874 = vmul.f32 %v832, %v716
        %v875 = vmul.f32 %v840, %v717
        %v876 = vmul.f32 %v839, %v718
        %v877 = vmul.f32 %v809, %v719
        %v878 = vmul.f32 %v810, %v720
        %v879 = vmul.f32 %v846, %v721
        %v880 = vmul.f32 %v847, %v722
        %v881 = vmul.f32 %v853, %v723
        %v882 = vmul.f32 %v854, %v724
        %v883 = vmul.f32 %v860, %v725
        %v884 = vmul.f32 %v861, %v726
        %v885 = vmul.f32 %v867, %v727
        %v886 = vmul.f32 %v868, %v728
        %v887 = vpack.c.bf16 %v871, %v869
        %v888 = vpack.c.bf16 %v872, %v870
        %v889 = vpack.c.bf16 %v875, %v873
        %v890 = vpack.c.bf16 %v876, %v874
        %v891 = vpack.c.bf16 %v879, %v877
        %v892 = vpack.c.bf16 %v880, %v878
        %v893 = vpack.c.bf16 %v883, %v881
        %v894 = vpack.c.bf16 %v884, %v882
        %v895 = vpack.c.bf16 %v885, %v885
        %v896 = vpack.c.bf16 %v886, %v886
        %v897 = vld [vmem:[#allocation7] sm:$0xf]
        %v898 = vld [vmem:[%s5] sm:$0xff]
        %900 = vset.pattern.permute.xlu0 0
        %901 = vperm.xlu0 %900, %v898
        %v902 = vpop.permute.xlu0 %901
        %vm904 = vcmask 588800
        %v906 = vsel %vm904, %v897, 0
        %vm908 = vcmask 1043456
        %v910 = vsel %vm908, %v895, 0
        %v913 = vsel %vm908, %v896, 0
        %915 = vmatprep.subr.bf16.mxu0 %v888
        %916 = vmatpush1.bf16.msra.mxu0 %v887
        %917 = vmatprep.subr.bf16.mxu0 %v890
        %918 = vmatpush1.bf16.msra.mxu0 %v889
        %919 = vmatprep.subr.bf16.mxu0 %v892
        %920 = vmatpush1.bf16.msra.mxu0 %v891
        %921 = vmatprep.subr.bf16.mxu0 %v894
        %922 = vmatpush1.bf16.msra.mxu0 %v893
        %923 = vmatprep.subr.bf16.mxu0 %v913
        %924 = vmatpush1.bf16.msra.mxu0 %v910
        %925 = vmatprep.subr.bf16.mxu0 0
        %926 = vmatpush1.bf16.msra.mxu0 0
        %927 = vmatprep.subr.bf16.mxu0 0
        %928 = vmatpush1.bf16.msra.mxu0 0
        %929 = vmatprep.subr.bf16.mxu0 0
        %930 = vmatpush1.bf16.msra.mxu0 0
        %931 = vmatprep.subr.bf16.mxu0 0
        %932 = vmatpush1.bf16.msra.mxu0 0
        %933 = vmatprep.subr.bf16.mxu0 0
        %934 = vmatpush1.bf16.msra.mxu0 0
        %935 = vmatprep.subr.bf16.mxu0 0
        %936 = vmatpush1.bf16.msra.mxu0 0
        %937 = vmatprep.subr.bf16.mxu0 0
        %938 = vmatpush1.bf16.msra.mxu0 0
        %939 = vmatprep.subr.bf16.mxu0 0
        %940 = vmatpush1.bf16.msra.mxu0 0
        %941 = vmatprep.subr.bf16.mxu0 0
        %942 = vmatpush1.bf16.msra.mxu0 0
        %943 = vmatprep.subr.bf16.mxu0 0
        %944 = vmatpush1.bf16.msra.mxu0 0
        %945 = vmatprep.subr.bf16.mxu0 0
        %946 = vmatpush1.bf16.msra.mxu0 0
        %947 = vmatprep.mubr.bf16.mxu0 0
        %948 = vmatmul.mubr.bf16.gmra.mrb[0].mxu0 %v906
        %v949 = vpop.f32.mrb[0].mxu0
        %v950 = vadd.f32 %v902, %v949
        %v951 = vpop.f32.mrb[0].mxu0
        %v952 = vadd.f32 %v902, %v951
        %v953 = vpop.f32.mrb[0].mxu0
        %v954 = vpop.f32.mrb[0].mxu0
        %955 = vdwg.mxu0
        %956 = vrot.lane.b32.xlu0 %v950, 17
        %v957 = vpop.permute.xlu0 %956
        %958 = vrot.lane.b32.xlu0 %v952, 17
        %v959 = vpop.permute.xlu0 %958
        %v960 = vsel %vm817, %v957, %v959
        %v961 = vsel %vm817, %v959, %v957
        %962 = vrot.lane.b32.xlu0 %v950, 16
        %v963 = vpop.permute.xlu0 %962
        %964 = vrot.lane.b32.xlu0 %v952, 16
        %v965 = vpop.permute.xlu0 %964
        %v966 = vsel %vm824, %v963, %v965
        %v967 = vsel %vm824, %v965, %v963
        %968 = vrot.lane.b32.xlu0 %v950, 15
        %v969 = vpop.permute.xlu0 %968
        %970 = vrot.lane.b32.xlu0 %v952, 15
        %v971 = vpop.permute.xlu0 %970
        %v972 = vsel %vm831, %v969, %v971
        %v973 = vsel %vm831, %v971, %v969
        %974 = vrot.lane.b32.xlu0 %v950, 1
        %v975 = vpop.permute.xlu0 %974
        %976 = vrot.lane.b32.xlu0 %v952, 1
        %v977 = vpop.permute.xlu0 %976
        %v978 = vsel %vm838, %v975, %v977
        %v979 = vsel %vm838, %v977, %v975
        %980 = vrot.lane.b32.xlu0 %v950, 127
        %v981 = vpop.permute.xlu0 %980
        %982 = vrot.lane.b32.xlu0 %v952, 127
        %v983 = vpop.permute.xlu0 %982
        %v984 = vsel %vm845, %v981, %v983
        %v985 = vsel %vm845, %v983, %v981
        %986 = vrot.lane.b32.xlu0 %v950, 113
        %v987 = vpop.permute.xlu0 %986
        %988 = vrot.lane.b32.xlu0 %v952, 113
        %v989 = vpop.permute.xlu0 %988
        %v990 = vsel %vm852, %v987, %v989
        %v991 = vsel %vm852, %v989, %v987
        %992 = vrot.lane.b32.xlu0 %v950, 112
        %v993 = vpop.permute.xlu0 %992
        %994 = vrot.lane.b32.xlu0 %v952, 112
        %v995 = vpop.permute.xlu0 %994
        %v996 = vsel %vm859, %v993, %v995
        %v997 = vsel %vm859, %v995, %v993
        %998 = vrot.lane.b32.xlu0 %v950, 111
        %v999 = vpop.permute.xlu0 %998
        %1000 = vrot.lane.b32.xlu0 %v952, 111
        %v1001 = vpop.permute.xlu0 %1000
        %v1002 = vsel %vm866, %v999, %v1001
        %v1003 = vsel %vm866, %v1001, %v999
        %v1004 = vmul.f32 %v961, %v711
        %v1005 = vmul.f32 %v960, %v712
        %v1006 = vmul.f32 %v967, %v713
        %v1007 = vmul.f32 %v966, %v714
        %v1008 = vmul.f32 %v973, %v715
        %v1009 = vmul.f32 %v972, %v716
        %v1010 = vmul.f32 %v979, %v717
        %v1011 = vmul.f32 %v978, %v718
        %v1012 = vmul.f32 %v950, %v719
        %v1013 = vmul.f32 %v952, %v720
        %v1014 = vmul.f32 %v984, %v721
        %v1015 = vmul.f32 %v985, %v722
        %v1016 = vmul.f32 %v990, %v723
        %v1017 = vmul.f32 %v991, %v724
        %v1018 = vmul.f32 %v996, %v725
        %v1019 = vmul.f32 %v997, %v726
        %v1020 = vmul.f32 %v1002, %v727
        %v1021 = vmul.f32 %v1003, %v728
        %v1022 = vpack.c.bf16 %v1006, %v1004
        %v1023 = vpack.c.bf16 %v1007, %v1005
        %v1024 = vpack.c.bf16 %v1010, %v1008
        %v1025 = vpack.c.bf16 %v1011, %v1009
        %v1026 = vpack.c.bf16 %v1014, %v1012
        %v1027 = vpack.c.bf16 %v1015, %v1013
        %v1028 = vpack.c.bf16 %v1018, %v1016
        %v1029 = vpack.c.bf16 %v1019, %v1017
        %v1030 = vpack.c.bf16 %v1020, %v1020
        %v1031 = vpack.c.bf16 %v1021, %v1021
        %v1032 = vld [vmem:[#allocation9] sm:$0xf]
        %v1033 = vld [vmem:[%s7] sm:$0xff]
        %1035 = vset.pattern.permute.xlu0 0
        %1036 = vperm.xlu0 %1035, %v1033
        %v1037 = vpop.permute.xlu0 %1036
        %v1040 = vsel %vm904, %v1032, 0
        %v1043 = vsel %vm908, %v1030, 0
        %v1046 = vsel %vm908, %v1031, 0
        %1048 = vmatprep.subr.bf16.mxu0 %v1023
        %1049 = vmatpush1.bf16.msra.mxu0 %v1022
        %1050 = vmatprep.subr.bf16.mxu0 %v1025
        %1051 = vmatpush1.bf16.msra.mxu0 %v1024
        %1052 = vmatprep.subr.bf16.mxu0 %v1027
        %1053 = vmatpush1.bf16.msra.mxu0 %v1026
        %1054 = vmatprep.subr.bf16.mxu0 %v1029
        %1055 = vmatpush1.bf16.msra.mxu0 %v1028
        %1056 = vmatprep.subr.bf16.mxu0 %v1046
        %1057 = vmatpush1.bf16.msra.mxu0 %v1043
        %1058 = vmatprep.subr.bf16.mxu0 0
        %1059 = vmatpush1.bf16.msra.mxu0 0
        %1060 = vmatprep.subr.bf16.mxu0 0
        %1061 = vmatpush1.bf16.msra.mxu0 0
        %1062 = vmatprep.subr.bf16.mxu0 0
        %1063 = vmatpush1.bf16.msra.mxu0 0
        %1064 = vmatprep.subr.bf16.mxu0 0
        %1065 = vmatpush1.bf16.msra.mxu0 0
        %1066 = vmatprep.subr.bf16.mxu0 0
        %1067 = vmatpush1.bf16.msra.mxu0 0
        %1068 = vmatprep.subr.bf16.mxu0 0
        %1069 = vmatpush1.bf16.msra.mxu0 0
        %1070 = vmatprep.subr.bf16.mxu0 0
        %1071 = vmatpush1.bf16.msra.mxu0 0
        %1072 = vmatprep.subr.bf16.mxu0 0
        %1073 = vmatpush1.bf16.msra.mxu0 0
        %1074 = vmatprep.subr.bf16.mxu0 0
        %1075 = vmatpush1.bf16.msra.mxu0 0
        %1076 = vmatprep.subr.bf16.mxu0 0
        %1077 = vmatpush1.bf16.msra.mxu0 0
        %1078 = vmatprep.subr.bf16.mxu0 0
        %1079 = vmatpush1.bf16.msra.mxu0 0
        %1080 = vmatprep.mubr.bf16.mxu0 0
        %1081 = vmatmul.mubr.bf16.gmra.mrb[0].mxu0 %v1040
        %v1082 = vpop.f32.mrb[0].mxu0
        %v1083 = vadd.f32 %v1037, %v1082
        %v1084 = vpop.f32.mrb[0].mxu0
        %v1085 = vadd.f32 %v1037, %v1084
        %v1086 = vpop.f32.mrb[0].mxu0
        %v1087 = vpop.f32.mrb[0].mxu0
        %1088 = vdwg.mxu0
        %v1089 = vmax.f32 %v1083, 0.0
        %v1090 = vmax.f32 %v1085, 0.0
        %1091 = vrot.lane.b32.xlu0 %v1089, 17
        %v1092 = vpop.permute.xlu0 %1091
        %1093 = vrot.lane.b32.xlu0 %v1090, 17
        %v1094 = vpop.permute.xlu0 %1093
        %v1095 = vsel %vm817, %v1092, %v1094
        %v1096 = vsel %vm817, %v1094, %v1092
        %1097 = vrot.lane.b32.xlu0 %v1089, 16
        %v1098 = vpop.permute.xlu0 %1097
        %1099 = vrot.lane.b32.xlu0 %v1090, 16
        %v1100 = vpop.permute.xlu0 %1099
        %v1101 = vsel %vm824, %v1098, %v1100
        %v1102 = vsel %vm824, %v1100, %v1098
        %1103 = vrot.lane.b32.xlu0 %v1089, 15
        %v1104 = vpop.permute.xlu0 %1103
        %1105 = vrot.lane.b32.xlu0 %v1090, 15
        %v1106 = vpop.permute.xlu0 %1105
        %v1107 = vsel %vm831, %v1104, %v1106
        %v1108 = vsel %vm831, %v1106, %v1104
        %1109 = vrot.lane.b32.xlu0 %v1089, 1
        %v1110 = vpop.permute.xlu0 %1109
        %1111 = vrot.lane.b32.xlu0 %v1090, 1
        %v1112 = vpop.permute.xlu0 %1111
        %v1113 = vsel %vm838, %v1110, %v1112
        %v1114 = vsel %vm838, %v1112, %v1110
        %1115 = vrot.lane.b32.xlu0 %v1089, 127
        %v1116 = vpop.permute.xlu0 %1115
        %1117 = vrot.lane.b32.xlu0 %v1090, 127
        %v1118 = vpop.permute.xlu0 %1117
        %v1119 = vsel %vm845, %v1116, %v1118
        %v1120 = vsel %vm845, %v1118, %v1116
        %1121 = vrot.lane.b32.xlu0 %v1089, 113
        %v1122 = vpop.permute.xlu0 %1121
        %1123 = vrot.lane.b32.xlu0 %v1090, 113
        %v1124 = vpop.permute.xlu0 %1123
        %v1125 = vsel %vm852, %v1122, %v1124
        %v1126 = vsel %vm852, %v1124, %v1122
        %1127 = vrot.lane.b32.xlu0 %v1089, 112
        %v1128 = vpop.permute.xlu0 %1127
        %1129 = vrot.lane.b32.xlu0 %v1090, 112
        %v1130 = vpop.permute.xlu0 %1129
        %v1131 = vsel %vm859, %v1128, %v1130
        %v1132 = vsel %vm859, %v1130, %v1128
        %1133 = vrot.lane.b32.xlu0 %v1089, 111
        %v1134 = vpop.permute.xlu0 %1133
        %1135 = vrot.lane.b32.xlu0 %v1090, 111
        %v1136 = vpop.permute.xlu0 %1135
        %v1137 = vsel %vm866, %v1134, %v1136
        %v1138 = vsel %vm866, %v1136, %v1134
        %v1139 = vmul.f32 %v1096, %v711
        %v1140 = vmul.f32 %v1095, %v712
        %v1141 = vmul.f32 %v1102, %v713
        %v1142 = vmul.f32 %v1101, %v714
        %v1143 = vmul.f32 %v1108, %v715
        %v1144 = vmul.f32 %v1107, %v716
        %v1145 = vmul.f32 %v1114, %v717
        %v1146 = vmul.f32 %v1113, %v718
        %v1147 = vmul.f32 %v1089, %v719
        %v1148 = vmul.f32 %v1090, %v720
        %v1149 = vmul.f32 %v1119, %v721
        %v1150 = vmul.f32 %v1120, %v722
        %v1151 = vmul.f32 %v1125, %v723
        %v1152 = vmul.f32 %v1126, %v724
        %v1153 = vmul.f32 %v1131, %v725
        %v1154 = vmul.f32 %v1132, %v726
        %v1155 = vmul.f32 %v1137, %v727
        %v1156 = vmul.f32 %v1138, %v728
        %v1157 = vpack.c.bf16 %v1141, %v1139
        %v1158 = vpack.c.bf16 %v1142, %v1140
        %v1159 = vpack.c.bf16 %v1145, %v1143
        %v1160 = vpack.c.bf16 %v1146, %v1144
        %v1161 = vpack.c.bf16 %v1149, %v1147
        %v1162 = vpack.c.bf16 %v1150, %v1148
        %v1163 = vpack.c.bf16 %v1153, %v1151
        %v1164 = vpack.c.bf16 %v1154, %v1152
        %v1165 = vpack.c.bf16 %v1155, %v1155
        %v1166 = vpack.c.bf16 %v1156, %v1156
        %v1167 = vld [vmem:[#allocation10] sm:$0xf]
        %v1168 = vld [vmem:[%s9] sm:$0xff]
        %1170 = vset.pattern.permute.xlu0 0
        %1171 = vperm.xlu0 %1170, %v1168
        %v1172 = vpop.permute.xlu0 %1171
        %v1175 = vsel %vm904, %v1167, 0
        %v1178 = vsel %vm908, %v1165, 0
        %v1181 = vsel %vm908, %v1166, 0
        %1183 = vmatprep.subr.bf16.mxu0 %v1158
        %1184 = vmatpush1.bf16.msra.mxu0 %v1157
        %1185 = vmatprep.subr.bf16.mxu0 %v1160
        %1186 = vmatpush1.bf16.msra.mxu0 %v1159
        %1187 = vmatprep.subr.bf16.mxu0 %v1162
        %1188 = vmatpush1.bf16.msra.mxu0 %v1161
        %1189 = vmatprep.subr.bf16.mxu0 %v1164
        %1190 = vmatpush1.bf16.msra.mxu0 %v1163
        %1191 = vmatprep.subr.bf16.mxu0 %v1181
        %1192 = vmatpush1.bf16.msra.mxu0 %v1178
        %1193 = vmatprep.subr.bf16.mxu0 0
        %1194 = vmatpush1.bf16.msra.mxu0 0
        %1195 = vmatprep.subr.bf16.mxu0 0
        %1196 = vmatpush1.bf16.msra.mxu0 0
        %1197 = vmatprep.subr.bf16.mxu0 0
        %1198 = vmatpush1.bf16.msra.mxu0 0
        %1199 = vmatprep.subr.bf16.mxu0 0
        %1200 = vmatpush1.bf16.msra.mxu0 0
        %1201 = vmatprep.subr.bf16.mxu0 0
        %1202 = vmatpush1.bf16.msra.mxu0 0
        %1203 = vmatprep.subr.bf16.mxu0 0
        %1204 = vmatpush1.bf16.msra.mxu0 0
        %1205 = vmatprep.subr.bf16.mxu0 0
        %1206 = vmatpush1.bf16.msra.mxu0 0
        %1207 = vmatprep.subr.bf16.mxu0 0
        %1208 = vmatpush1.bf16.msra.mxu0 0
        %1209 = vmatprep.subr.bf16.mxu0 0
        %1210 = vmatpush1.bf16.msra.mxu0 0
        %1211 = vmatprep.subr.bf16.mxu0 0
        %1212 = vmatpush1.bf16.msra.mxu0 0
        %1213 = vmatprep.subr.bf16.mxu0 0
        %1214 = vmatpush1.bf16.msra.mxu0 0
        %1215 = vmatprep.mubr.bf16.mxu0 0
        %1216 = vmatmul.mubr.bf16.gmra.mrb[0].mxu0 %v1175
        %v1217 = vpop.f32.mrb[0].mxu0
        %v1218 = vadd.f32 %v1172, %v1217
        %v1219 = vpop.f32.mrb[0].mxu0
        %v1220 = vadd.f32 %v1172, %v1219
        %v1221 = vpop.f32.mrb[0].mxu0
        %v1222 = vpop.f32.mrb[0].mxu0
        %1223 = vdwg.mxu0
        %v1224 = vadd.f32 %v950, %v1218
        %v1225 = vadd.f32 %v952, %v1220
        %1226 = vrot.lane.b32.xlu0 %v1224, 17
        %v1227 = vpop.permute.xlu0 %1226
        %1228 = vrot.lane.b32.xlu0 %v1225, 17
        %v1229 = vpop.permute.xlu0 %1228
        %v1230 = vsel %vm817, %v1227, %v1229
        %v1231 = vsel %vm817, %v1229, %v1227
        %1232 = vrot.lane.b32.xlu0 %v1224, 16
        %v1233 = vpop.permute.xlu0 %1232
        %1234 = vrot.lane.b32.xlu0 %v1225, 16
        %v1235 = vpop.permute.xlu0 %1234
        %v1236 = vsel %vm824, %v1233, %v1235
        %v1237 = vsel %vm824, %v1235, %v1233
        %1238 = vrot.lane.b32.xlu0 %v1224, 15
        %v1239 = vpop.permute.xlu0 %1238
        %1240 = vrot.lane.b32.xlu0 %v1225, 15
        %v1241 = vpop.permute.xlu0 %1240
        %v1242 = vsel %vm831, %v1239, %v1241
        %v1243 = vsel %vm831, %v1241, %v1239
        %1244 = vrot.lane.b32.xlu0 %v1224, 1
        %v1245 = vpop.permute.xlu0 %1244
        %1246 = vrot.lane.b32.xlu0 %v1225, 1
        %v1247 = vpop.permute.xlu0 %1246
        %v1248 = vsel %vm838, %v1245, %v1247
        %v1249 = vsel %vm838, %v1247, %v1245
        %1250 = vrot.lane.b32.xlu0 %v1224, 127
        %v1251 = vpop.permute.xlu0 %1250
        %1252 = vrot.lane.b32.xlu0 %v1225, 127
        %v1253 = vpop.permute.xlu0 %1252
        %v1254 = vsel %vm845, %v1251, %v1253
        %v1255 = vsel %vm845, %v1253, %v1251
        %1256 = vrot.lane.b32.xlu0 %v1224, 113
        %v1257 = vpop.permute.xlu0 %1256
        %1258 = vrot.lane.b32.xlu0 %v1225, 113
        %v1259 = vpop.permute.xlu0 %1258
        %v1260 = vsel %vm852, %v1257, %v1259
        %v1261 = vsel %vm852, %v1259, %v1257
        %1262 = vrot.lane.b32.xlu0 %v1224, 112
        %v1263 = vpop.permute.xlu0 %1262
        %1264 = vrot.lane.b32.xlu0 %v1225, 112
        %v1265 = vpop.permute.xlu0 %1264
        %v1266 = vsel %vm859, %v1263, %v1265
        %v1267 = vsel %vm859, %v1265, %v1263
        %1268 = vrot.lane.b32.xlu0 %v1224, 111
        %v1269 = vpop.permute.xlu0 %1268
        %1270 = vrot.lane.b32.xlu0 %v1225, 111
        %v1271 = vpop.permute.xlu0 %1270
        %v1272 = vsel %vm866, %v1269, %v1271
        %v1273 = vsel %vm866, %v1271, %v1269
        %v1274 = vmul.f32 %v1231, %v711
        %v1275 = vmul.f32 %v1230, %v712
        %v1276 = vmul.f32 %v1237, %v713
        %v1277 = vmul.f32 %v1236, %v714
        %v1278 = vmul.f32 %v1243, %v715
        %v1279 = vmul.f32 %v1242, %v716
        %v1280 = vmul.f32 %v1249, %v717
        %v1281 = vmul.f32 %v1248, %v718
        %v1282 = vmul.f32 %v1224, %v719
        %v1283 = vmul.f32 %v1225, %v720
        %v1284 = vmul.f32 %v1254, %v721
        %v1285 = vmul.f32 %v1255, %v722
        %v1286 = vmul.f32 %v1260, %v723
        %v1287 = vmul.f32 %v1261, %v724
        %v1288 = vmul.f32 %v1266, %v725
        %v1289 = vmul.f32 %v1267, %v726
        %v1290 = vmul.f32 %v1272, %v727
        %v1291 = vmul.f32 %v1273, %v728
        %v1292 = vpack.c.bf16 %v1276, %v1274
        %v1293 = vpack.c.bf16 %v1277, %v1275
        %v1294 = vpack.c.bf16 %v1280, %v1278
        %v1295 = vpack.c.bf16 %v1281, %v1279
        %v1296 = vpack.c.bf16 %v1284, %v1282
        %v1297 = vpack.c.bf16 %v1285, %v1283
        %v1298 = vpack.c.bf16 %v1288, %v1286
        %v1299 = vpack.c.bf16 %v1289, %v1287
        %v1300 = vpack.c.bf16 %v1290, %v1290
        %v1301 = vpack.c.bf16 %v1291, %v1291
        %v1302 = vld [vmem:[#allocation12] sm:$0xf]
        %v1303 = vld [vmem:[%s11] sm:$0xff]
        %1305 = vset.pattern.permute.xlu0 0
        %1306 = vperm.xlu0 %1305, %v1303
        %v1307 = vpop.permute.xlu0 %1306
        %v1310 = vsel %vm904, %v1302, 0
        %v1313 = vsel %vm908, %v1300, 0
        %v1316 = vsel %vm908, %v1301, 0
        %1318 = vmatprep.subr.bf16.mxu0 %v1293
        %1319 = vmatpush1.bf16.msra.mxu0 %v1292
        %1320 = vmatprep.subr.bf16.mxu0 %v1295
        %1321 = vmatpush1.bf16.msra.mxu0 %v1294
        %1322 = vmatprep.subr.bf16.mxu0 %v1297
        %1323 = vmatpush1.bf16.msra.mxu0 %v1296
        %1324 = vmatprep.subr.bf16.mxu0 %v1299
        %1325 = vmatpush1.bf16.msra.mxu0 %v1298
        %1326 = vmatprep.subr.bf16.mxu0 %v1316
        %1327 = vmatpush1.bf16.msra.mxu0 %v1313
        %1328 = vmatprep.subr.bf16.mxu0 0
        %1329 = vmatpush1.bf16.msra.mxu0 0
        %1330 = vmatprep.subr.bf16.mxu0 0
        %1331 = vmatpush1.bf16.msra.mxu0 0
        %1332 = vmatprep.subr.bf16.mxu0 0
        %1333 = vmatpush1.bf16.msra.mxu0 0
        %1334 = vmatprep.subr.bf16.mxu0 0
        %1335 = vmatpush1.bf16.msra.mxu0 0
        %1336 = vmatprep.subr.bf16.mxu0 0
        %1337 = vmatpush1.bf16.msra.mxu0 0
        %1338 = vmatprep.subr.bf16.mxu0 0
        %1339 = vmatpush1.bf16.msra.mxu0 0
        %1340 = vmatprep.subr.bf16.mxu0 0
        %1341 = vmatpush1.bf16.msra.mxu0 0
        %1342 = vmatprep.subr.bf16.mxu0 0
        %1343 = vmatpush1.bf16.msra.mxu0 0
        %1344 = vmatprep.subr.bf16.mxu0 0
        %1345 = vmatpush1.bf16.msra.mxu0 0
        %1346 = vmatprep.subr.bf16.mxu0 0
        %1347 = vmatpush1.bf16.msra.mxu0 0
        %1348 = vmatprep.subr.bf16.mxu0 0
        %1349 = vmatpush1.bf16.msra.mxu0 0
        %1350 = vmatprep.mubr.bf16.mxu0 0
        %1351 = vmatmul.mubr.bf16.gmra.mrb[0].mxu0 %v1310
        %v1352 = vpop.f32.mrb[0].mxu0
        %v1353 = vadd.f32 %v1307, %v1352
        %v1354 = vpop.f32.mrb[0].mxu0
        %v1355 = vadd.f32 %v1307, %v1354
        %v1356 = vpop.f32.mrb[0].mxu0
        %v1357 = vpop.f32.mrb[0].mxu0
        %1358 = vdwg.mxu0
        %v1359 = vmax.f32 %v1353, 0.0
        %v1360 = vmax.f32 %v1355, 0.0
        %1361 = vrot.lane.b32.xlu0 %v1359, 17
        %v1362 = vpop.permute.xlu0 %1361
        %1363 = vrot.lane.b32.xlu0 %v1360, 17
        %v1364 = vpop.permute.xlu0 %1363
        %v1365 = vsel %vm817, %v1362, %v1364
        %v1366 = vsel %vm817, %v1364, %v1362
        %1367 = vrot.lane.b32.xlu0 %v1359, 16
        %v1368 = vpop.permute.xlu0 %1367
        %1369 = vrot.lane.b32.xlu0 %v1360, 16
        %v1370 = vpop.permute.xlu0 %1369
        %v1371 = vsel %vm824, %v1368, %v1370
        %v1372 = vsel %vm824, %v1370, %v1368
        %1373 = vrot.lane.b32.xlu0 %v1359, 15
        %v1374 = vpop.permute.xlu0 %1373
        %1375 = vrot.lane.b32.xlu0 %v1360, 15
        %v1376 = vpop.permute.xlu0 %1375
        %v1377 = vsel %vm831, %v1374, %v1376
        %v1378 = vsel %vm831, %v1376, %v1374
        %1379 = vrot.lane.b32.xlu0 %v1359, 1
        %v1380 = vpop.permute.xlu0 %1379
        %1381 = vrot.lane.b32.xlu0 %v1360, 1
        %v1382 = vpop.permute.xlu0 %1381
        %v1383 = vsel %vm838, %v1380, %v1382
        %v1384 = vsel %vm838, %v1382, %v1380
        %1385 = vrot.lane.b32.xlu0 %v1359, 127
        %v1386 = vpop.permute.xlu0 %1385
        %1387 = vrot.lane.b32.xlu0 %v1360, 127
        %v1388 = vpop.permute.xlu0 %1387
        %v1389 = vsel %vm845, %v1386, %v1388
        %v1390 = vsel %vm845, %v1388, %v1386
        %1391 = vrot.lane.b32.xlu0 %v1359, 113
        %v1392 = vpop.permute.xlu0 %1391
        %1393 = vrot.lane.b32.xlu0 %v1360, 113
        %v1394 = vpop.permute.xlu0 %1393
        %v1395 = vsel %vm852, %v1392, %v1394
        %v1396 = vsel %vm852, %v1394, %v1392
        %1397 = vrot.lane.b32.xlu0 %v1359, 112
        %v1398 = vpop.permute.xlu0 %1397
        %1399 = vrot.lane.b32.xlu0 %v1360, 112
        %v1400 = vpop.permute.xlu0 %1399
        %v1401 = vsel %vm859, %v1398, %v1400
        %v1402 = vsel %vm859, %v1400, %v1398
        %1403 = vrot.lane.b32.xlu0 %v1359, 111
        %v1404 = vpop.permute.xlu0 %1403
        %1405 = vrot.lane.b32.xlu0 %v1360, 111
        %v1406 = vpop.permute.xlu0 %1405
        %v1407 = vsel %vm866, %v1404, %v1406
        %v1408 = vsel %vm866, %v1406, %v1404
        %v1409 = vmul.f32 %v1366, %v711
        %v1410 = vmul.f32 %v1365, %v712
        %v1411 = vmul.f32 %v1372, %v713
        %v1412 = vmul.f32 %v1371, %v714
        %v1413 = vmul.f32 %v1378, %v715
        %v1414 = vmul.f32 %v1377, %v716
        %v1415 = vmul.f32 %v1384, %v717
        %v1416 = vmul.f32 %v1383, %v718
        %v1417 = vmul.f32 %v1359, %v719
        %v1418 = vmul.f32 %v1360, %v720
        %v1419 = vmul.f32 %v1389, %v721
        %v1420 = vmul.f32 %v1390, %v722
        %v1421 = vmul.f32 %v1395, %v723
        %v1422 = vmul.f32 %v1396, %v724
        %v1423 = vmul.f32 %v1401, %v725
        %v1424 = vmul.f32 %v1402, %v726
        %v1425 = vmul.f32 %v1407, %v727
        %v1426 = vmul.f32 %v1408, %v728
        %v1427 = vpack.c.bf16 %v1411, %v1409
        %v1428 = vpack.c.bf16 %v1412, %v1410
        %v1429 = vpack.c.bf16 %v1415, %v1413
        %v1430 = vpack.c.bf16 %v1416, %v1414
        %v1431 = vpack.c.bf16 %v1419, %v1417
        %v1432 = vpack.c.bf16 %v1420, %v1418
        %v1433 = vpack.c.bf16 %v1423, %v1421
        %v1434 = vpack.c.bf16 %v1424, %v1422
        %v1435 = vpack.c.bf16 %v1425, %v1425
        %v1436 = vpack.c.bf16 %v1426, %v1426
        %v1437 = vld [vmem:[#allocation13] sm:$0xf]
        %v1438 = vld [vmem:[%s13] sm:$0xff]
        %1440 = vset.pattern.permute.xlu0 0
        %1441 = vperm.xlu0 %1440, %v1438
        %v1442 = vpop.permute.xlu0 %1441
        %v1445 = vsel %vm904, %v1437, 0
        %v1448 = vsel %vm908, %v1435, 0
        %v1451 = vsel %vm908, %v1436, 0
        %1453 = vmatprep.subr.bf16.mxu0 %v1428
        %1454 = vmatpush1.bf16.msra.mxu0 %v1427
        %1455 = vmatprep.subr.bf16.mxu0 %v1430
        %1456 = vmatpush1.bf16.msra.mxu0 %v1429
        %1457 = vmatprep.subr.bf16.mxu0 %v1432
        %1458 = vmatpush1.bf16.msra.mxu0 %v1431
        %1459 = vmatprep.subr.bf16.mxu0 %v1434
        %1460 = vmatpush1.bf16.msra.mxu0 %v1433
        %1461 = vmatprep.subr.bf16.mxu0 %v1451
        %1462 = vmatpush1.bf16.msra.mxu0 %v1448
        %1463 = vmatprep.subr.bf16.mxu0 0
        %1464 = vmatpush1.bf16.msra.mxu0 0
        %1465 = vmatprep.subr.bf16.mxu0 0
        %1466 = vmatpush1.bf16.msra.mxu0 0
        %1467 = vmatprep.subr.bf16.mxu0 0
        %1468 = vmatpush1.bf16.msra.mxu0 0
        %1469 = vmatprep.subr.bf16.mxu0 0
        %1470 = vmatpush1.bf16.msra.mxu0 0
        %1471 = vmatprep.subr.bf16.mxu0 0
        %1472 = vmatpush1.bf16.msra.mxu0 0
        %1473 = vmatprep.subr.bf16.mxu0 0
        %1474 = vmatpush1.bf16.msra.mxu0 0
        %1475 = vmatprep.subr.bf16.mxu0 0
        %1476 = vmatpush1.bf16.msra.mxu0 0
        %1477 = vmatprep.subr.bf16.mxu0 0
        %1478 = vmatpush1.bf16.msra.mxu0 0
        %1479 = vmatprep.subr.bf16.mxu0 0
        %1480 = vmatpush1.bf16.msra.mxu0 0
        %1481 = vmatprep.subr.bf16.mxu0 0
        %1482 = vmatpush1.bf16.msra.mxu0 0
        %1483 = vmatprep.subr.bf16.mxu0 0
        %1484 = vmatpush1.bf16.msra.mxu0 0
        %1485 = vmatprep.mubr.bf16.mxu0 0
        %1486 = vmatmul.mubr.bf16.gmra.mrb[0].mxu0 %v1445
        %v1487 = vpop.f32.mrb[0].mxu0
        %v1488 = vadd.f32 %v1442, %v1487
        %v1489 = vpop.f32.mrb[0].mxu0
        %v1490 = vadd.f32 %v1442, %v1489
        %v1491 = vpop.f32.mrb[0].mxu0
        %v1492 = vpop.f32.mrb[0].mxu0
        %1493 = vdwg.mxu0
        %v1494 = vadd.f32 %v1224, %v1488
        %v1495 = vadd.f32 %v1225, %v1490
        %v1496 = vadd.f32 %v1494, %v950
        %v1497 = vadd.f32 %v1495, %v952
        %1498 = vrot.lane.b32.xlu0 %v1496, 17
        %v1499 = vpop.permute.xlu0 %1498
        %1500 = vrot.lane.b32.xlu0 %v1497, 17
        %v1501 = vpop.permute.xlu0 %1500
        %v1502 = vsel %vm817, %v1499, %v1501
        %v1503 = vsel %vm817, %v1501, %v1499
        %1504 = vrot.lane.b32.xlu0 %v1496, 16
        %v1505 = vpop.permute.xlu0 %1504
        %1506 = vrot.lane.b32.xlu0 %v1497, 16
        %v1507 = vpop.permute.xlu0 %1506
        %v1508 = vsel %vm824, %v1505, %v1507
        %v1509 = vsel %vm824, %v1507, %v1505
        %1510 = vrot.lane.b32.xlu0 %v1496, 15
        %v1511 = vpop.permute.xlu0 %1510
        %1512 = vrot.lane.b32.xlu0 %v1497, 15
        %v1513 = vpop.permute.xlu0 %1512
        %v1514 = vsel %vm831, %v1511, %v1513
        %v1515 = vsel %vm831, %v1513, %v1511
        %1516 = vrot.lane.b32.xlu0 %v1496, 1
        %v1517 = vpop.permute.xlu0 %1516
        %1518 = vrot.lane.b32.xlu0 %v1497, 1
        %v1519 = vpop.permute.xlu0 %1518
        %v1520 = vsel %vm838, %v1517, %v1519
        %v1521 = vsel %vm838, %v1519, %v1517
        %1522 = vrot.lane.b32.xlu0 %v1496, 127
        %v1523 = vpop.permute.xlu0 %1522
        %1524 = vrot.lane.b32.xlu0 %v1497, 127
        %v1525 = vpop.permute.xlu0 %1524
        %v1526 = vsel %vm845, %v1523, %v1525
        %v1527 = vsel %vm845, %v1525, %v1523
        %1528 = vrot.lane.b32.xlu0 %v1496, 113
        %v1529 = vpop.permute.xlu0 %1528
        %1530 = vrot.lane.b32.xlu0 %v1497, 113
        %v1531 = vpop.permute.xlu0 %1530
        %v1532 = vsel %vm852, %v1529, %v1531
        %v1533 = vsel %vm852, %v1531, %v1529
        %1534 = vrot.lane.b32.xlu0 %v1496, 112
        %v1535 = vpop.permute.xlu0 %1534
        %1536 = vrot.lane.b32.xlu0 %v1497, 112
        %v1537 = vpop.permute.xlu0 %1536
        %v1538 = vsel %vm859, %v1535, %v1537
        %v1539 = vsel %vm859, %v1537, %v1535
        %1540 = vrot.lane.b32.xlu0 %v1496, 111
        %v1541 = vpop.permute.xlu0 %1540
        %1542 = vrot.lane.b32.xlu0 %v1497, 111
        %v1543 = vpop.permute.xlu0 %1542
        %v1544 = vsel %vm866, %v1541, %v1543
        %v1545 = vsel %vm866, %v1543, %v1541
        %v1546 = vmul.f32 %v1503, %v711
        %v1547 = vmul.f32 %v1502, %v712
        %v1548 = vmul.f32 %v1509, %v713
        %v1549 = vmul.f32 %v1508, %v714
        %v1550 = vmul.f32 %v1515, %v715
        %v1551 = vmul.f32 %v1514, %v716
        %v1552 = vmul.f32 %v1521, %v717
        %v1553 = vmul.f32 %v1520, %v718
        %v1554 = vmul.f32 %v1496, %v719
        %v1555 = vmul.f32 %v1497, %v720
        %v1556 = vmul.f32 %v1526, %v721
        %v1557 = vmul.f32 %v1527, %v722
        %v1558 = vmul.f32 %v1532, %v723
        %v1559 = vmul.f32 %v1533, %v724
        %v1560 = vmul.f32 %v1538, %v725
        %v1561 = vmul.f32 %v1539, %v726
        %v1562 = vmul.f32 %v1544, %v727
        %v1563 = vmul.f32 %v1545, %v728
        %v1564 = vpack.c.bf16 %v1548, %v1546
        %v1565 = vpack.c.bf16 %v1549, %v1547
        %v1566 = vpack.c.bf16 %v1552, %v1550
        %v1567 = vpack.c.bf16 %v1553, %v1551
        %v1568 = vpack.c.bf16 %v1556, %v1554
        %v1569 = vpack.c.bf16 %v1557, %v1555
        %v1570 = vpack.c.bf16 %v1560, %v1558
        %v1571 = vpack.c.bf16 %v1561, %v1559
        %v1572 = vpack.c.bf16 %v1562, %v1562
        %v1573 = vpack.c.bf16 %v1563, %v1563
        %v1574 = vld [vmem:[#allocation15] sm:$0xf]
        %v1575 = vld [vmem:[#allocation15 + $0x4] sm:$0xf]
        %v1576 = vld [vmem:[#allocation15 + $0x8] sm:$0xf]
        %v1577 = vld [vmem:[#allocation15 + $0xc] sm:$0xf]
        %v1578 = vld [vmem:[%s15] sm:$0xff]
        %v1579 = vld [vmem:[%s15 + $0x8] sm:$0xff]
        %v1580 = vld [vmem:[%s15 + $0x10] sm:$0xff]
        %v1581 = vld [vmem:[%s15 + $0x18] sm:$0xff]
        %1583 = vset.pattern.permute.xlu0 0
        %1584 = vperm.xlu0 %1583, %v1578
        %v1585 = vpop.permute.xlu0 %1584
        %1588 = vset.pattern.permute.xlu0 0
        %1589 = vperm.xlu0 %1588, %v1579
        %v1590 = vpop.permute.xlu0 %1589
        %1593 = vset.pattern.permute.xlu0 0
        %1594 = vperm.xlu0 %1593, %v1580
        %v1595 = vpop.permute.xlu0 %1594
        %1598 = vset.pattern.permute.xlu0 0
        %1599 = vperm.xlu0 %1598, %v1581
        %v1600 = vpop.permute.xlu0 %1599
        %v1606 = vunpack.c.l.b16 %v1574
        %v1607 = vunpack.c.l.b16 %v1575
        %v1608 = vunpack.c.l.b16 %v1576
        %v1609 = vunpack.c.l.b16 %v1577
        %v1610 = vpack.c.b16 %v1607, %v1606
        %v1611 = vpack.c.b16 %v1609, %v1608
        %v1613 = vsel %vm904, %v1610, 0
        %v1616 = vsel %vm904, %v1611, 0
        %v1619 = vsel %vm908, %v1572, 0
        %v1622 = vsel %vm908, %v1573, 0
        %1624 = vmatprep.subr.bf16.mxu0 %v1565
        %1625 = vmatpush1.bf16.msra.mxu0 %v1564
        %1626 = vmatprep.subr.bf16.mxu0 %v1567
        %1627 = vmatpush1.bf16.msra.mxu0 %v1566
        %1628 = vmatprep.subr.bf16.mxu0 %v1569
        %1629 = vmatpush1.bf16.msra.mxu0 %v1568
        %1630 = vmatprep.subr.bf16.mxu0 %v1571
        %1631 = vmatpush1.bf16.msra.mxu0 %v1570
        %1632 = vmatprep.subr.bf16.mxu0 %v1622
        %1633 = vmatpush1.bf16.msra.mxu0 %v1619
        %1634 = vmatprep.subr.bf16.mxu0 0
        %1635 = vmatpush1.bf16.msra.mxu0 0
        %1636 = vmatprep.subr.bf16.mxu0 0
        %1637 = vmatpush1.bf16.msra.mxu0 0
        %1638 = vmatprep.subr.bf16.mxu0 0
        %1639 = vmatpush1.bf16.msra.mxu0 0
        %1640 = vmatprep.subr.bf16.mxu0 0
        %1641 = vmatpush1.bf16.msra.mxu0 0
        %1642 = vmatprep.subr.bf16.mxu0 0
        %1643 = vmatpush1.bf16.msra.mxu0 0
        %1644 = vmatprep.subr.bf16.mxu0 0
        %1645 = vmatpush1.bf16.msra.mxu0 0
        %1646 = vmatprep.subr.bf16.mxu0 0
        %1647 = vmatpush1.bf16.msra.mxu0 0
        %1648 = vmatprep.subr.bf16.mxu0 0
        %1649 = vmatpush1.bf16.msra.mxu0 0
        %1650 = vmatprep.subr.bf16.mxu0 0
        %1651 = vmatpush1.bf16.msra.mxu0 0
        %1652 = vmatprep.subr.bf16.mxu0 0
        %1653 = vmatpush1.bf16.msra.mxu0 0
        %1654 = vmatprep.subr.bf16.mxu0 0
        %1655 = vmatpush1.bf16.msra.mxu0 0
        %1656 = vmatprep.mubr.bf16.mxu0 0
        %1657 = vmatmul.mubr.bf16.gmra.mrb[0].mxu0 %v1613
        %v1658 = vpop.f32.mrb[0].mxu0
        %v1659 = vadd.f32 %v1585, %v1658
        %v1660 = vpop.f32.mrb[0].mxu0
        %v1661 = vadd.f32 %v1585, %v1660
        %v1662 = vpop.f32.mrb[0].mxu0
        %v1663 = vadd.f32 %v1590, %v1662
        %v1664 = vpop.f32.mrb[0].mxu0
        %v1665 = vadd.f32 %v1590, %v1664
        %1666 = vmatprep.mubr.bf16.mxu0 0
        %1667 = vmatmul.mubr.bf16.gmra.mrb[0].mxu0 %v1616
        %v1668 = vpop.f32.mrb[0].mxu0
        %v1669 = vadd.f32 %v1595, %v1668
        %v1670 = vpop.f32.mrb[0].mxu0
        %v1671 = vadd.f32 %v1595, %v1670
        %v1672 = vpop.f32.mrb[0].mxu0
        %v1673 = vadd.f32 %v1600, %v1672
        %v1674 = vpop.f32.mrb[0].mxu0
        %v1675 = vadd.f32 %v1600, %v1674
        %1676 = vdwg.mxu0
        %1677 = vrot.lane.b32.xlu0 %v1659, 17
        %v1678 = vpop.permute.xlu0 %1677
        %1679 = vrot.lane.b32.xlu0 %v1663, 17
        %v1680 = vpop.permute.xlu0 %1679
        %1681 = vrot.lane.b32.xlu0 %v1669, 17
        %v1682 = vpop.permute.xlu0 %1681
        %1683 = vrot.lane.b32.xlu0 %v1673, 17
        %v1684 = vpop.permute.xlu0 %1683
        %1685 = vrot.lane.b32.xlu0 %v1661, 17
        %v1686 = vpop.permute.xlu0 %1685
        %1687 = vrot.lane.b32.xlu0 %v1665, 17
        %v1688 = vpop.permute.xlu0 %1687
        %1689 = vrot.lane.b32.xlu0 %v1671, 17
        %v1690 = vpop.permute.xlu0 %1689
        %1691 = vrot.lane.b32.xlu0 %v1675, 17
        %v1692 = vpop.permute.xlu0 %1691
        %v1693 = vsel %vm817, %v1678, %v1686
        %v1694 = vsel %vm817, %v1680, %v1688
        %v1695 = vsel %vm817, %v1682, %v1690
        %v1696 = vsel %vm817, %v1684, %v1692
        %v1697 = vsel %vm817, %v1686, %v1678
        %v1698 = vsel %vm817, %v1688, %v1680
        %v1699 = vsel %vm817, %v1690, %v1682
        %v1700 = vsel %vm817, %v1692, %v1684
        %1701 = vrot.lane.b32.xlu0 %v1659, 16
        %v1702 = vpop.permute.xlu0 %1701
        %1703 = vrot.lane.b32.xlu0 %v1663, 16
        %v1704 = vpop.permute.xlu0 %1703
        %1705 = vrot.lane.b32.xlu0 %v1669, 16
        %v1706 = vpop.permute.xlu0 %1705
        %1707 = vrot.lane.b32.xlu0 %v1673, 16
        %v1708 = vpop.permute.xlu0 %1707
        %1709 = vrot.lane.b32.xlu0 %v1661, 16
        %v1710 = vpop.permute.xlu0 %1709
        %1711 = vrot.lane.b32.xlu0 %v1665, 16
        %v1712 = vpop.permute.xlu0 %1711
        %1713 = vrot.lane.b32.xlu0 %v1671, 16
        %v1714 = vpop.permute.xlu0 %1713
        %1715 = vrot.lane.b32.xlu0 %v1675, 16
        %v1716 = vpop.permute.xlu0 %1715
        %v1717 = vsel %vm824, %v1702, %v1710
        %v1718 = vsel %vm824, %v1704, %v1712
        %v1719 = vsel %vm824, %v1706, %v1714
        %v1720 = vsel %vm824, %v1708, %v1716
        %v1721 = vsel %vm824, %v1710, %v1702
        %v1722 = vsel %vm824, %v1712, %v1704
        %v1723 = vsel %vm824, %v1714, %v1706
        %v1724 = vsel %vm824, %v1716, %v1708
        %1725 = vrot.lane.b32.xlu0 %v1659, 15
        %v1726 = vpop.permute.xlu0 %1725
        %1727 = vrot.lane.b32.xlu0 %v1663, 15
        %v1728 = vpop.permute.xlu0 %1727
        %1729 = vrot.lane.b32.xlu0 %v1669, 15
        %v1730 = vpop.permute.xlu0 %1729
        %1731 = vrot.lane.b32.xlu0 %v1673, 15
        %v1732 = vpop.permute.xlu0 %1731
        %1733 = vrot.lane.b32.xlu0 %v1661, 15
        %v1734 = vpop.permute.xlu0 %1733
        %1735 = vrot.lane.b32.xlu0 %v1665, 15
        %v1736 = vpop.permute.xlu0 %1735
        %1737 = vrot.lane.b32.xlu0 %v1671, 15
        %v1738 = vpop.permute.xlu0 %1737
        %1739 = vrot.lane.b32.xlu0 %v1675, 15
        %v1740 = vpop.permute.xlu0 %1739
        %v1741 = vsel %vm831, %v1726, %v1734
        %v1742 = vsel %vm831, %v1728, %v1736
        %v1743 = vsel %vm831, %v1730, %v1738
        %v1744 = vsel %vm831, %v1732, %v1740
        %v1745 = vsel %vm831, %v1734, %v1726
        %v1746 = vsel %vm831, %v1736, %v1728
        %v1747 = vsel %vm831, %v1738, %v1730
        %v1748 = vsel %vm831, %v1740, %v1732
        %1749 = vrot.lane.b32.xlu0 %v1659, 1
        %v1750 = vpop.permute.xlu0 %1749
        %1751 = vrot.lane.b32.xlu0 %v1663, 1
        %v1752 = vpop.permute.xlu0 %1751
        %1753 = vrot.lane.b32.xlu0 %v1669, 1
        %v1754 = vpop.permute.xlu0 %1753
        %1755 = vrot.lane.b32.xlu0 %v1673, 1
        %v1756 = vpop.permute.xlu0 %1755
        %1757 = vrot.lane.b32.xlu0 %v1661, 1
        %v1758 = vpop.permute.xlu0 %1757
        %1759 = vrot.lane.b32.xlu0 %v1665, 1
        %v1760 = vpop.permute.xlu0 %1759
        %1761 = vrot.lane.b32.xlu0 %v1671, 1
        %v1762 = vpop.permute.xlu0 %1761
        %1763 = vrot.lane.b32.xlu0 %v1675, 1
        %v1764 = vpop.permute.xlu0 %1763
        %v1765 = vsel %vm838, %v1750, %v1758
        %v1766 = vsel %vm838, %v1752, %v1760
        %v1767 = vsel %vm838, %v1754, %v1762
        %v1768 = vsel %vm838, %v1756, %v1764
        %v1769 = vsel %vm838, %v1758, %v1750
        %v1770 = vsel %vm838, %v1760, %v1752
        %v1771 = vsel %vm838, %v1762, %v1754
        %v1772 = vsel %vm838, %v1764, %v1756
        %1773 = vrot.lane.b32.xlu0 %v1659, 127
        %v1774 = vpop.permute.xlu0 %1773
        %1775 = vrot.lane.b32.xlu0 %v1663, 127
        %v1776 = vpop.permute.xlu0 %1775
        %1777 = vrot.lane.b32.xlu0 %v1669, 127
        %v1778 = vpop.permute.xlu0 %1777
        %1779 = vrot.lane.b32.xlu0 %v1673, 127
        %v1780 = vpop.permute.xlu0 %1779
        %1781 = vrot.lane.b32.xlu0 %v1661, 127
        %v1782 = vpop.permute.xlu0 %1781
        %1783 = vrot.lane.b32.xlu0 %v1665, 127
        %v1784 = vpop.permute.xlu0 %1783
        %1785 = vrot.lane.b32.xlu0 %v1671, 127
        %v1786 = vpop.permute.xlu0 %1785
        %1787 = vrot.lane.b32.xlu0 %v1675, 127
        %v1788 = vpop.permute.xlu0 %1787
        %v1789 = vsel %vm845, %v1774, %v1782
        %v1790 = vsel %vm845, %v1776, %v1784
        %v1791 = vsel %vm845, %v1778, %v1786
        %v1792 = vsel %vm845, %v1780, %v1788
        %v1793 = vsel %vm845, %v1782, %v1774
        %v1794 = vsel %vm845, %v1784, %v1776
        %v1795 = vsel %vm845, %v1786, %v1778
        %v1796 = vsel %vm845, %v1788, %v1780
        %1797 = vrot.lane.b32.xlu0 %v1659, 113
        %v1798 = vpop.permute.xlu0 %1797
        %1799 = vrot.lane.b32.xlu0 %v1663, 113
        %v1800 = vpop.permute.xlu0 %1799
        %1801 = vrot.lane.b32.xlu0 %v1669, 113
        %v1802 = vpop.permute.xlu0 %1801
        %1803 = vrot.lane.b32.xlu0 %v1673, 113
        %v1804 = vpop.permute.xlu0 %1803
        %1805 = vrot.lane.b32.xlu0 %v1661, 113
        %v1806 = vpop.permute.xlu0 %1805
        %1807 = vrot.lane.b32.xlu0 %v1665, 113
        %v1808 = vpop.permute.xlu0 %1807
        %1809 = vrot.lane.b32.xlu0 %v1671, 113
        %v1810 = vpop.permute.xlu0 %1809
        %1811 = vrot.lane.b32.xlu0 %v1675, 113
        %v1812 = vpop.permute.xlu0 %1811
        %v1813 = vsel %vm852, %v1798, %v1806
        %v1814 = vsel %vm852, %v1800, %v1808
        %v1815 = vsel %vm852, %v1802, %v1810
        %v1816 = vsel %vm852, %v1804, %v1812
        %v1817 = vsel %vm852, %v1806, %v1798
        %v1818 = vsel %vm852, %v1808, %v1800
        %v1819 = vsel %vm852, %v1810, %v1802
        %v1820 = vsel %vm852, %v1812, %v1804
        %1821 = vrot.lane.b32.xlu0 %v1659, 112
        %v1822 = vpop.permute.xlu0 %1821
        %1823 = vrot.lane.b32.xlu0 %v1663, 112
        %v1824 = vpop.permute.xlu0 %1823
        %1825 = vrot.lane.b32.xlu0 %v1669, 112
        %v1826 = vpop.permute.xlu0 %1825
        %1827 = vrot.lane.b32.xlu0 %v1673, 112
        %v1828 = vpop.permute.xlu0 %1827
        %1829 = vrot.lane.b32.xlu0 %v1661, 112
        %v1830 = vpop.permute.xlu0 %1829
        %1831 = vrot.lane.b32.xlu0 %v1665, 112
        %v1832 = vpop.permute.xlu0 %1831
        %1833 = vrot.lane.b32.xlu0 %v1671, 112
        %v1834 = vpop.permute.xlu0 %1833
        %1835 = vrot.lane.b32.xlu0 %v1675, 112
        %v1836 = vpop.permute.xlu0 %1835
        %v1837 = vsel %vm859, %v1822, %v1830
        %v1838 = vsel %vm859, %v1824, %v1832
        %v1839 = vsel %vm859, %v1826, %v1834
        %v1840 = vsel %vm859, %v1828, %v1836
        %v1841 = vsel %vm859, %v1830, %v1822
        %v1842 = vsel %vm859, %v1832, %v1824
        %v1843 = vsel %vm859, %v1834, %v1826
        %v1844 = vsel %vm859, %v1836, %v1828
        %1845 = vrot.lane.b32.xlu0 %v1659, 111
        %v1846 = vpop.permute.xlu0 %1845
        %1847 = vrot.lane.b32.xlu0 %v1663, 111
        %v1848 = vpop.permute.xlu0 %1847
        %1849 = vrot.lane.b32.xlu0 %v1669, 111
        %v1850 = vpop.permute.xlu0 %1849
        %1851 = vrot.lane.b32.xlu0 %v1673, 111
        %v1852 = vpop.permute.xlu0 %1851
        %1853 = vrot.lane.b32.xlu0 %v1661, 111
        %v1854 = vpop.permute.xlu0 %1853
        %1855 = vrot.lane.b32.xlu0 %v1665, 111
        %v1856 = vpop.permute.xlu0 %1855
        %1857 = vrot.lane.b32.xlu0 %v1671, 111
        %v1858 = vpop.permute.xlu0 %1857
        %1859 = vrot.lane.b32.xlu0 %v1675, 111
        %v1860 = vpop.permute.xlu0 %1859
        %v1861 = vsel %vm866, %v1846, %v1854
        %v1862 = vsel %vm866, %v1848, %v1856
        %v1863 = vsel %vm866, %v1850, %v1858
        %v1864 = vsel %vm866, %v1852, %v1860
        %v1865 = vsel %vm866, %v1854, %v1846
        %v1866 = vsel %vm866, %v1856, %v1848
        %v1867 = vsel %vm866, %v1858, %v1850
        %v1868 = vsel %vm866, %v1860, %v1852
        %v1869 = vmul.f32 %v1697, %v729
        %v1870 = vmul.f32 %v1693, %v730
        %v1871 = vmul.f32 %v1698, %v731
        %v1872 = vmul.f32 %v1694, %v732
        %v1873 = vmul.f32 %v1699, %v733
        %v1874 = vmul.f32 %v1695, %v734
        %v1875 = vmul.f32 %v1700, %v735
        %v1876 = vmul.f32 %v1696, %v736
        %v1877 = vmul.f32 %v1721, %v737
        %v1878 = vmul.f32 %v1717, %v738
        %v1879 = vmul.f32 %v1722, %v739
        %v1880 = vmul.f32 %v1718, %v740
        %v1881 = vmul.f32 %v1723, %v741
        %v1882 = vmul.f32 %v1719, %v742
        %v1883 = vmul.f32 %v1724, %v743
        %v1884 = vmul.f32 %v1720, %v744
        %v1885 = vmul.f32 %v1745, %v745
        %v1886 = vmul.f32 %v1741, %v746
        %v1887 = vmul.f32 %v1746, %v747
        %v1888 = vmul.f32 %v1742, %v748
        %v1889 = vmul.f32 %v1747, %v749
        %v1890 = vmul.f32 %v1743, %v750
        %v1891 = vmul.f32 %v1748, %v751
        %v1892 = vmul.f32 %v1744, %v752
        %v1893 = vmul.f32 %v1769, %v753
        %v1894 = vmul.f32 %v1765, %v754
        %v1895 = vmul.f32 %v1770, %v755
        %v1896 = vmul.f32 %v1766, %v756
        %v1897 = vmul.f32 %v1771, %v757
        %v1898 = vmul.f32 %v1767, %v758
        %v1899 = vmul.f32 %v1772, %v759
        %v1900 = vmul.f32 %v1768, %v760
        %v1901 = vmul.f32 %v1659, %v761
        %v1902 = vmul.f32 %v1661, %v762
        %v1903 = vmul.f32 %v1663, %v763
        %v1904 = vmul.f32 %v1665, %v764
        %v1905 = vmul.f32 %v1669, %v765
        %v1906 = vmul.f32 %v1671, %v766
        %v1907 = vmul.f32 %v1673, %v767
        %v1908 = vmul.f32 %v1675, %v768
        %v1909 = vmul.f32 %v1789, %v769
        %v1910 = vmul.f32 %v1793, %v770
        %v1911 = vmul.f32 %v1790, %v771
        %v1912 = vmul.f32 %v1794, %v772
        %v1913 = vmul.f32 %v1791, %v773
        %v1914 = vmul.f32 %v1795, %v774
        %v1915 = vmul.f32 %v1792, %v775
        %v1916 = vmul.f32 %v1796, %v776
        %v1917 = vmul.f32 %v1813, %v777
        %v1918 = vmul.f32 %v1817, %v778
        %v1919 = vmul.f32 %v1814, %v779
        %v1920 = vmul.f32 %v1818, %v780
        %v1921 = vmul.f32 %v1815, %v781
        %v1922 = vmul.f32 %v1819, %v782
        %v1923 = vmul.f32 %v1816, %v783
        %v1924 = vmul.f32 %v1820, %v784
        %v1925 = vmul.f32 %v1837, %v785
        %v1926 = vmul.f32 %v1841, %v786
        %v1927 = vmul.f32 %v1838, %v787
        %v1928 = vmul.f32 %v1842, %v788
        %v1929 = vmul.f32 %v1839, %v789
        %v1930 = vmul.f32 %v1843, %v790
        %v1931 = vmul.f32 %v1840, %v791
        %v1932 = vmul.f32 %v1844, %v792
        %v1933 = vmul.f32 %v1861, %v793
        %v1934 = vmul.f32 %v1865, %v794
        %v1935 = vmul.f32 %v1862, %v795
        %v1936 = vmul.f32 %v1866, %v796
        %v1937 = vmul.f32 %v1863, %v797
        %v1938 = vmul.f32 %v1867, %v798
        %v1939 = vmul.f32 %v1864, %v799
        %v1940 = vmul.f32 %v1868, %v800
        %v1941 = vpack.c.bf16 %v1871, %v1869
        %v1942 = vpack.c.bf16 %v1872, %v1870
        %v1943 = vpack.c.bf16 %v1875, %v1873
        %v1944 = vpack.c.bf16 %v1876, %v1874
        %v1945 = vpack.c.bf16 %v1879, %v1877
        %v1946 = vpack.c.bf16 %v1880, %v1878
        %v1947 = vpack.c.bf16 %v1883, %v1881
        %v1948 = vpack.c.bf16 %v1884, %v1882
        %v1949 = vpack.c.bf16 %v1887, %v1885
        %v1950 = vpack.c.bf16 %v1888, %v1886
        %v1951 = vpack.c.bf16 %v1891, %v1889
        %v1952 = vpack.c.bf16 %v1892, %v1890
        %v1953 = vpack.c.bf16 %v1895, %v1893
        %v1954 = vpack.c.bf16 %v1896, %v1894
        %v1955 = vpack.c.bf16 %v1899, %v1897
        %v1956 = vpack.c.bf16 %v1900, %v1898
        %v1957 = vpack.c.bf16 %v1903, %v1901
        %v1958 = vpack.c.bf16 %v1904, %v1902
        %v1959 = vpack.c.bf16 %v1907, %v1905
        %v1960 = vpack.c.bf16 %v1908, %v1906
        %v1961 = vpack.c.bf16 %v1911, %v1909
        %v1962 = vpack.c.bf16 %v1912, %v1910
        %v1963 = vpack.c.bf16 %v1915, %v1913
        %v1964 = vpack.c.bf16 %v1916, %v1914
        %v1965 = vpack.c.bf16 %v1919, %v1917
        %v1966 = vpack.c.bf16 %v1920, %v1918
        %v1967 = vpack.c.bf16 %v1923, %v1921
        %v1968 = vpack.c.bf16 %v1924, %v1922
        %v1969 = vpack.c.bf16 %v1927, %v1925
        %v1970 = vpack.c.bf16 %v1928, %v1926
        %v1971 = vpack.c.bf16 %v1931, %v1929
        %v1972 = vpack.c.bf16 %v1932, %v1930
        %v1973 = vpack.c.bf16 %v1935, %v1933
        %v1974 = vpack.c.bf16 %v1936, %v1934
        %v1975 = vpack.c.bf16 %v1939, %v1937
        %v1976 = vpack.c.bf16 %v1940, %v1938
        %v1977 = vld [vmem:[#allocation16] sm:$0xff]
        %v1978 = vld [vmem:[#allocation16 + $0x8] sm:$0xf]
        %v1979 = vld [vmem:[#allocation16 + $0xc] sm:$0x33]
        %v1980 = vld [vmem:[#allocation16 + $0x14] sm:$0x3]
        %v1981 = vld [vmem:[%s17] sm:$0xff]
        %v1982 = vld [vmem:[%s17 + $0x8] sm:$0xf]
        %1984 = vset.pattern.permute.xlu0 0
        %1985 = vperm.xlu0 %1984, %v1981
        %v1986 = vpop.permute.xlu0 %1985
        %1989 = vset.pattern.permute.xlu0 0
        %1990 = vperm.xlu0 %1989, %v1982
        %v1991 = vpop.permute.xlu0 %1990
        %v1997 = vunpack.c.l.b16 %v1977
        %v1998 = vunpack.c.h.b16 %v1977
        %v1999 = vunpack.c.l.b16 %v1978
        %v2000 = vunpack.c.l.b16 %v1979
        %v2001 = vunpack.c.h.b16 %v1979
        %v2002 = vunpack.c.l.b16 %v1980
        %v2003 = vpack.c.b16 %v2000, %v1997
        %v2004 = vpack.c.b16 %v2001, %v1998
        %v2005 = vpack.c.b16 %v2002, %v1999
        %vm2008 = vcmask 261120
        %v2010 = vsel %vm2008, %v2005, 0
        %2012 = vmatprep.subr.bf16.mxu0 %v1942
        %2013 = vmatpush1.bf16.msra.mxu0 %v1941
        %2014 = vmatprep.subr.bf16.mxu0 %v1944
        %2015 = vmatpush1.bf16.msra.mxu0 %v1943
        %2016 = vmatprep.subr.bf16.mxu0 %v1946
        %2017 = vmatpush1.bf16.msra.mxu0 %v1945
        %2018 = vmatprep.subr.bf16.mxu0 %v1948
        %2019 = vmatpush1.bf16.msra.mxu0 %v1947
        %2020 = vmatprep.subr.bf16.mxu0 %v1950
        %2021 = vmatpush1.bf16.msra.mxu0 %v1949
        %2022 = vmatprep.subr.bf16.mxu0 %v1952
        %2023 = vmatpush1.bf16.msra.mxu0 %v1951
        %2024 = vmatprep.subr.bf16.mxu0 %v1954
        %2025 = vmatpush1.bf16.msra.mxu0 %v1953
        %2026 = vmatprep.subr.bf16.mxu0 %v1956
        %2027 = vmatpush1.bf16.msra.mxu0 %v1955
        %2028 = vmatprep.subr.bf16.mxu0 %v1958
        %2029 = vmatpush1.bf16.msra.mxu0 %v1957
        %2030 = vmatprep.subr.bf16.mxu0 %v1960
        %2031 = vmatpush1.bf16.msra.mxu0 %v1959
        %2032 = vmatprep.subr.bf16.mxu0 %v1962
        %2033 = vmatpush1.bf16.msra.mxu0 %v1961
        %2034 = vmatprep.subr.bf16.mxu0 %v1964
        %2035 = vmatpush1.bf16.msra.mxu0 %v1963
        %2036 = vmatprep.subr.bf16.mxu0 %v1966
        %2037 = vmatpush1.bf16.msra.mxu0 %v1965
        %2038 = vmatprep.subr.bf16.mxu0 %v1968
        %2039 = vmatpush1.bf16.msra.mxu0 %v1967
        %2040 = vmatprep.subr.bf16.mxu0 %v1970
        %2041 = vmatpush1.bf16.msra.mxu0 %v1969
        %2042 = vmatprep.subr.bf16.mxu0 %v1972
        %2043 = vmatpush1.bf16.msra.mxu0 %v1971
        %2044 = vmatprep.mubr.bf16.mxu0 %v2004
        %2045 = vmatmul.mubr.bf16.gmra.mrb[0].mxu0 %v2003
        %v2046 = vpop.f32.mrb[0].mxu0
        %v2047 = vadd.f32 %v1986, %v2046
        %v2048 = vpop.f32.mrb[0].mxu0
        %v2049 = vadd.f32 %v1986, %v2048
        %v2050 = vpop.f32.mrb[0].mxu0
        %v2051 = vadd.f32 %v1991, %v2050
        %v2052 = vpop.f32.mrb[0].mxu0
        %v2053 = vadd.f32 %v1991, %v2052
        %2054 = vdwg.mxu0
        %2055 = vmatprep.subr.bf16.mxu0 %v1974
        %2056 = vmatpush1.bf16.msra.mxu0 %v1973
        %2057 = vmatprep.subr.bf16.mxu0 %v1976
        %2058 = vmatpush1.bf16.msra.mxu0 %v1975
        %2059 = vmatprep.subr.bf16.mxu0 0
        %2060 = vmatpush1.bf16.msra.mxu0 0
        %2061 = vmatprep.subr.bf16.mxu0 0
        %2062 = vmatpush1.bf16.msra.mxu0 0
        %2063 = vmatprep.subr.bf16.mxu0 0
        %2064 = vmatpush1.bf16.msra.mxu0 0
        %2065 = vmatprep.subr.bf16.mxu0 0
        %2066 = vmatpush1.bf16.msra.mxu0 0
        %2067 = vmatprep.subr.bf16.mxu0 0
        %2068 = vmatpush1.bf16.msra.mxu0 0
        %2069 = vmatprep.subr.bf16.mxu0 0
        %2070 = vmatpush1.bf16.msra.mxu0 0
        %2071 = vmatprep.subr.bf16.mxu0 0
        %2072 = vmatpush1.bf16.msra.mxu0 0
        %2073 = vmatprep.subr.bf16.mxu0 0
        %2074 = vmatpush1.bf16.msra.mxu0 0
        %2075 = vmatprep.subr.bf16.mxu0 0
        %2076 = vmatpush1.bf16.msra.mxu0 0
        %2077 = vmatprep.subr.bf16.mxu0 0
        %2078 = vmatpush1.bf16.msra.mxu0 0
        %2079 = vmatprep.subr.bf16.mxu0 0
        %2080 = vmatpush1.bf16.msra.mxu0 0
        %2081 = vmatprep.subr.bf16.mxu0 0
        %2082 = vmatpush1.bf16.msra.mxu0 0
        %2083 = vmatprep.subr.bf16.mxu0 0
        %2084 = vmatpush1.bf16.msra.mxu0 0
        %2085 = vmatprep.subr.bf16.mxu0 0
        %2086 = vmatpush1.bf16.msra.mxu0 0
        %2087 = vmatprep.mubr.bf16.mxu0 0
        %2088 = vmatmul.mubr.bf16.gmra.mrb[0].mxu0 %v2010
        %v2089 = vpop.f32.mrb[0].mxu0
        %v2090 = vadd.f32 %v2047, %v2089
        %v2091 = vpop.f32.mrb[0].mxu0
        %v2092 = vadd.f32 %v2049, %v2091
        %v2093 = vpop.f32.mrb[0].mxu0
        %v2094 = vadd.f32 %v2051, %v2093
        %v2095 = vpop.f32.mrb[0].mxu0
        %v2096 = vadd.f32 %v2053, %v2095
        %2097 = vdwg.mxu0
        %2098 = vst [vmem:[%s709] sm:$0xff] %v2090
        %2099 = vst [vmem:[%s709 + $0x8] sm:$0xff] %v2092
        %2100 = vst [vmem:[%s709 + $0x10] sm:$0xf] %v2094
        %2101 = vst [vmem:[%s709 + $0x18] sm:$0xf] %v2096
        %p2102 = scmp.lt.s32.totalorder %s35, 1
        %s2103 = scalar_select %p2102, %s35, 1
        %s2104 = smul.addr %s2103, 4
        %s2105 = smul.addr %s2104, 8
        %s2106 = scalar_lea.vmem %s18, %s2105
        // Predicated region
        $region133: #{edsr_plus_forward.1} parent=91 // pred_check
          %p2107 = pneg %p436
        $region134: #{edsr_plus_forward.1} parent=91 // pred_check_branch
          %2109 = sbr.rel (%p2107) target = $region136
        $region135: #{edsr_plus_forward.1} parent=91 // pred_region
          _
        $region136: #{edsr_plus_forward.1} parent=91 // pred_fallthru
          _
      $region92: #{edsr_plus_forward.1} parent=5 // pred_fallthru
        _
      %p2110 = scmp.le.s32.totalorder 2, %s30
      // Predicated region
      $region137: #{edsr_plus_forward.1} parent=5 // pred_check
        %p2111 = pneg %p2110
      $region138: #{edsr_plus_forward.1} parent=5 // pred_check_branch
        %2113 = sbr.rel (%p2111) target = $region140
      $region139: #{edsr_plus_forward.1} parent=5 // pred_region
        %s2114 = ssub.s32 %s30, 2
        // Predicated region
        $region141: #{edsr_plus_forward.1} parent=139 // pred_check
          %p2115 = pneg %p442
        $region142: #{edsr_plus_forward.1} parent=139 // pred_check_branch
          %2117 = sbr.rel (%p2115) target = $region144
        $region143: #{edsr_plus_forward.1} parent=139 // pred_region
          %p2118 = scmp.lt.s32.totalorder %s36, 1
          %s2119 = scalar_select %p2118, %s36, 1
          %s2120 = smul.addr %s2119, 4
          %s2121 = smul.addr %s2120, 8
          %s2122 = scalar_lea.vmem %s18, %s2121
        $region144: #{edsr_plus_forward.1} parent=139 // pred_fallthru
          _
      $region140: #{edsr_plus_forward.1} parent=5 // pred_fallthru
        _
    $region6: #{edsr_plus_forward.1} parent=1 // loop_footer
      %s34 = sadd.s32 1, %s30
    $region7: #{edsr_plus_forward.1} parent=1 // loop_footer_branch
      %29 = sbr.rel target = $region3
    $region8: #{edsr_plus_forward.1} parent=1 // loop_exit
      _
    %2123 = vsyncpa [#allocation3], 1
    %s2124 = scalar_lea.sflag [#allocation3], 1
    %2125 = vsyncpa %s2124, 1
    %2126 = vsyncpa [#allocation5], 1
    %2127 = vsyncpa [#allocation8], 1
    %2128 = vsyncpa [#allocation11], 1
    %2129 = vsyncpa [#allocation14], 1
    %2130 = vsyncpa [#allocation17], 1

</llo_original>
